<compile_context>
chip_gen: v7x
topology: tpu7x:2x2x1
jax: 0.10.0
libtpu: 0.0.40
codegen_flags: <defaults>
</compile_context>

<pallas_src>
import functools

import jax
import jax.numpy as jnp
from jax.experimental import pallas as pl
from jax.experimental.pallas import tpu as pltpu


def _flow_kernel(x_ref, w1_ref, b1_ref, w2_ref, b2_ref, zs_ref, ld_ref, *,
                 parities, half):
    """One batch tile, all flows.

    x_ref  : VMEM (d, TM)            -- input tile, transposed (batch on lanes)
    w1_ref : VMEM (F, H, h)   b1_ref : VMEM (F, H, 1)
    w2_ref : VMEM (F, d, H)   b2_ref : VMEM (F, d, 1)
    zs_ref : VMEM (F, d, TM)         -- per-flow outputs (transposed)
    ld_ref : VMEM (1, TM)            -- accumulated log|det J|
    """
    h = half
    x = x_ref[...]                                     # (d, TM) f32
    ld = jnp.zeros((1, x.shape[1]), jnp.float32)

    # Static (trace-time) sweep over flows: parity is resolved per iteration, weights
    # are indexed with static ints, and x is carried as a value (never leaves VMEM).
    for f, parity in enumerate(parities):
        if parity:
            x0 = x[h:, :]                              # conditioner half
            x1 = x[:h, :]                              # transformed half
        else:
            x0 = x[:h, :]
            x1 = x[h:, :]

        # Conditioner MLP (MXU), f32 accumulate.
        hid = jnp.tanh(
            jnp.dot(w1_ref[f], x0, preferred_element_type=jnp.float32)
            + b1_ref[f])                               # (H, TM)
        st = (jnp.dot(w2_ref[f], hid, preferred_element_type=jnp.float32)
              + b2_ref[f])                             # (d, TM)
        s = st[:h, :]                                  # log-scale
        t = st[h:, :]                                  # shift

        z1 = x1 * jnp.exp(s) + t                       # (h, TM)

        # Re-assemble halves (sublane concat at vreg-aligned boundary).
        if parity:
            x = jnp.concatenate([z1, x0], axis=0)
        else:
            x = jnp.concatenate([x0, z1], axis=0)

        zs_ref[f] = x                                  # full-lane-width store
        ld = ld + jnp.sum(s, axis=0, keepdims=True)    # (1, TM)

    ld_ref[...] = ld


def normalizing_flow_forward(x, stacked, *, tm=None):
    """stacked: w1t (F,H,h), b1t (F,H,1), w2t (F,d,H), b2t (F,d,1), parity tuple."""
    m, d = x.shape
    h = d // 2
    w1t, b1t, w2t, b2t = stacked["w1t"], stacked["b1t"], stacked["w2t"], stacked["b2t"]
    parities = stacked["parity"]                       # static python tuple
    n_flows, H, _ = w1t.shape

    if tm is None:
        # >=2 batch tiles when possible (v7x has 2 TCs); multiple of 128 lanes; cap 2048.
        tm = max(128, min(2048, ((pl.cdiv(m, 2) + 127) // 128) * 128))
    m_pad = pl.cdiv(m, tm) * tm

    # Lane-dense layout: batch -> lanes.  One transpose here, one per output below.
    x_t = x.T
    if m_pad != m:
        x_t = jnp.pad(x_t, ((0, 0), (0, m_pad - m)))

    kernel = functools.partial(_flow_kernel, parities=parities, half=h)
    zs_out, ld_out = pl.pallas_call(
        kernel,
        out_shape=(
            jax.ShapeDtypeStruct((n_flows, d, m_pad), jnp.float32),
            jax.ShapeDtypeStruct((1, m_pad), jnp.float32),
        ),
        grid=(m_pad // tm,),
        in_specs=[
            pl.BlockSpec((d, tm), lambda i: (0, i)),              # x tile (transposed)
            pl.BlockSpec((n_flows, H, h), lambda i: (0, 0, 0)),   # all w1 (resident)
            pl.BlockSpec((n_flows, H, 1), lambda i: (0, 0, 0)),   # all b1
            pl.BlockSpec((n_flows, d, H), lambda i: (0, 0, 0)),   # all w2
            pl.BlockSpec((n_flows, d, 1), lambda i: (0, 0, 0)),   # all b2
        ],
        out_specs=(
            pl.BlockSpec((n_flows, d, tm), lambda i: (0, 0, i)),  # zs (all flows)
            pl.BlockSpec((1, tm), lambda i: (0, i)),              # log_det
        ),
        compiler_params=pltpu.CompilerParams(
            dimension_semantics=("parallel",),
        ),
    )(x_t, w1t, b1t, w2t, b2t)

    zs = [x] + [zs_out[i, :, :m].T for i in range(n_flows)]
    log_det = ld_out[0, :m]
    return zs, log_det


class NormalizingFlowPallas:
    """A sequence of Normalizing Flows is a Normalizing Flow (forward only)."""

    def __init__(self, flow_params, *, tm=None):
        # Pre-transpose weights into the lane-dense (batch-on-lanes) layout.
        self.stacked = {
            "w1t": jnp.stack([p["w1"].T for p in flow_params]),   # (F, H, h)
            "b1t": jnp.stack([p["b1"].T for p in flow_params]),   # (F, H, 1)
            "w2t": jnp.stack([p["w2"].T for p in flow_params]),   # (F, d, H)
            "b2t": jnp.stack([p["b2"].T for p in flow_params]),   # (F, d, 1)
            "parity": tuple(int(p["parity"]) for p in flow_params),
        }
        self.tm = tm

    def forward(self, x):
        return normalizing_flow_forward(x, self.stacked, tm=self.tm)


def make_flow_params(key, n_flows, d, hidden):
    h = d // 2
    params = []
    for i in range(n_flows):
        k1, k2, k3, k4, key = jax.random.split(jax.random.fold_in(key, i), 5)
        params.append({
            "w1": 0.1 * jax.random.normal(k1, (h, hidden), dtype=jnp.float32),
            "b1": 0.1 * jax.random.normal(k2, (1, hidden), dtype=jnp.float32),
            "w2": 0.1 * jax.random.normal(k3, (hidden, d), dtype=jnp.float32),
            "b2": 0.1 * jax.random.normal(k4, (1, d), dtype=jnp.float32),
            "parity": i % 2,
        })
    return params


def _reference_forward(x, flow_params):
    """Pure-JAX reference for correctness checking."""
    m, d = x.shape
    h = d // 2
    log_det = jnp.zeros((m,), jnp.float32)
    zs = [x]
    for p in flow_params:
        xin = jnp.concatenate([x[:, h:], x[:, :h]], axis=1) if p["parity"] else x
        x0, x1 = xin[:, :h], xin[:, h:]
        hid = jnp.tanh(x0 @ p["w1"] + p["b1"])
        st = hid @ p["w2"] + p["b2"]
        s, t = st[:, :h], st[:, h:]
        z = jnp.concatenate([x0, x1 * jnp.exp(s) + t], axis=1)
        if p["parity"]:
            z = jnp.concatenate([z[:, h:], z[:, :h]], axis=1)
        x = z
        log_det = log_det + jnp.sum(s, axis=1)
        zs.append(x)
    return zs, log_det


if __name__ == "__main__":
    key = jax.random.PRNGKey(0)
    m, d, hidden, n_flows = 256, 16, 32, 4

    kx, kp = jax.random.split(key)
    x = jax.random.normal(kx, (m, d), dtype=jnp.float32)
    flow_params = make_flow_params(kp, n_flows, d, hidden)

    # Default tm -> 128 -> 2 batch tiles (exercises the parallel batch pipeline / megacore).
    nf = NormalizingFlowPallas(flow_params)
    zs, log_det = nf.forward(x)
    jax.block_until_ready(zs[-1])
    jax.block_until_ready(log_det)

    zs_ref, ld_ref = _reference_forward(x, flow_params)
    assert len(zs) == n_flows + 1
    for a, b in zip(zs, zs_ref):
        assert jnp.allclose(a, b, atol=1e-4, rtol=1e-4)
    assert jnp.allclose(log_det, ld_ref, atol=1e-4, rtol=1e-4)

    print("KERNEL_OK")
</pallas_src>

<mosaic_0001>
module attributes {stable_mosaic.version = 11 : i64} {
  func.func @_flow_kernel(%arg0: i32, %arg1: memref<16x128xf32, #tpu.memory_space<vmem>>, %arg2: memref<4x32x8xf32, #tpu.memory_space<vmem>>, %arg3: memref<4x32x1xf32, #tpu.memory_space<vmem>>, %arg4: memref<4x16x32xf32, #tpu.memory_space<vmem>>, %arg5: memref<4x16x1xf32, #tpu.memory_space<vmem>>, %arg6: memref<4x16x128xf32, #tpu.memory_space<vmem>>, %arg7: memref<1x128xf32, #tpu.memory_space<vmem>>) attributes {dimension_semantics = [#tpu.dimension_semantics<parallel>], iteration_bounds = array<i64: 2>, scalar_prefetch = 0 : i64, scratch_operands = 0 : i64, tpu.core_type = #tpu.core_type<tc>, window_params = [{transform_indices = @transform_0, window_bounds = array<i64: 16, 128>}, {pipeline_mode = #tpu.pipeline_mode<synchronous>, transform_indices = @transform_1, window_bounds = array<i64: 4, 32, 8>}, {pipeline_mode = #tpu.pipeline_mode<synchronous>, transform_indices = @transform_2, window_bounds = array<i64: 4, 32, 1>}, {pipeline_mode = #tpu.pipeline_mode<synchronous>, transform_indices = @transform_3, window_bounds = array<i64: 4, 16, 32>}, {pipeline_mode = #tpu.pipeline_mode<synchronous>, transform_indices = @transform_4, window_bounds = array<i64: 4, 16, 1>}, {transform_indices = @transform_5, window_bounds = array<i64: 4, 16, 128>}, {transform_indices = @transform_6, window_bounds = array<i64: 1, 128>}]} {
    %c0 = arith.constant 0 : index
    %c0_0 = arith.constant 0 : index
    %0 = vector.load %arg1[%c0, %c0_0] : memref<16x128xf32, #tpu.memory_space<vmem>>, vector<16x128xf32>
    %cst = arith.constant 0.000000e+00 : f32
    %1 = vector.broadcast %cst : f32 to vector<1x128xf32>
    %2 = vector.extract_strided_slice %0 {offsets = [0, 0], sizes = [8, 128], strides = [1, 1]} : vector<16x128xf32> to vector<8x128xf32>
    %3 = vector.extract_strided_slice %0 {offsets = [8, 0], sizes = [8, 128], strides = [1, 1]} : vector<16x128xf32> to vector<8x128xf32>
    %c0_1 = arith.constant 0 : index
    %c0_2 = arith.constant 0 : index
    %c0_3 = arith.constant 0 : index
    %4 = vector.load %arg2[%c0_1, %c0_2, %c0_3] : memref<4x32x8xf32, #tpu.memory_space<vmem>>, vector<1x32x8xf32>
    %5 = vector.shape_cast %4 : vector<1x32x8xf32> to vector<32x8xf32>
    %cst_4 = arith.constant dense<0.000000e+00> : vector<32x128xf32>
    %6 = tpu.matmul %5, %2, %cst_4 {dimension_numbers = #tpu.dot_dimension_numbers<[1], [0], [0], [1], [0, 0, 1, 1], [], []>} : vector<32x8xf32>, vector<8x128xf32>, vector<32x128xf32> -> vector<32x128xf32>
    %c0_5 = arith.constant 0 : index
    %c0_6 = arith.constant 0 : index
    %c0_7 = arith.constant 0 : index
    %7 = vector.load %arg3[%c0_5, %c0_6, %c0_7] : memref<4x32x1xf32, #tpu.memory_space<vmem>>, vector<1x32x1xf32>
    %8 = vector.shape_cast %7 : vector<1x32x1xf32> to vector<32x1xf32>
    %9 = vector.broadcast %8 : vector<32x1xf32> to vector<32x128xf32>
    %10 = arith.addf %6, %9 : vector<32x128xf32>
    %11 = math.tanh %10 : vector<32x128xf32>
    %c0_8 = arith.constant 0 : index
    %c0_9 = arith.constant 0 : index
    %c0_10 = arith.constant 0 : index
    %12 = vector.load %arg4[%c0_8, %c0_9, %c0_10] : memref<4x16x32xf32, #tpu.memory_space<vmem>>, vector<1x16x32xf32>
    %13 = vector.shape_cast %12 : vector<1x16x32xf32> to vector<16x32xf32>
    %cst_11 = arith.constant dense<0.000000e+00> : vector<16x128xf32>
    %14 = tpu.matmul %13, %11, %cst_11 {dimension_numbers = #tpu.dot_dimension_numbers<[1], [0], [0], [1], [0, 0, 1, 1], [], []>} : vector<16x32xf32>, vector<32x128xf32>, vector<16x128xf32> -> vector<16x128xf32>
    %c0_12 = arith.constant 0 : index
    %c0_13 = arith.constant 0 : index
    %c0_14 = arith.constant 0 : index
    %15 = vector.load %arg5[%c0_12, %c0_13, %c0_14] : memref<4x16x1xf32, #tpu.memory_space<vmem>>, vector<1x16x1xf32>
    %16 = vector.shape_cast %15 : vector<1x16x1xf32> to vector<16x1xf32>
    %17 = vector.broadcast %16 : vector<16x1xf32> to vector<16x128xf32>
    %18 = arith.addf %14, %17 : vector<16x128xf32>
    %19 = vector.extract_strided_slice %18 {offsets = [0, 0], sizes = [8, 128], strides = [1, 1]} : vector<16x128xf32> to vector<8x128xf32>
    %20 = vector.extract_strided_slice %18 {offsets = [8, 0], sizes = [8, 128], strides = [1, 1]} : vector<16x128xf32> to vector<8x128xf32>
    %21 = math.exp %19 : vector<8x128xf32>
    %22 = arith.mulf %3, %21 : vector<8x128xf32>
    %23 = arith.addf %22, %20 : vector<8x128xf32>
    %24 = tpu.concatenate %2, %23 in 0 : vector<8x128xf32>, vector<8x128xf32> -> vector<16x128xf32>
    %c0_15 = arith.constant 0 : index
    %c0_16 = arith.constant 0 : index
    %c0_17 = arith.constant 0 : index
    %25 = vector.load %arg6[%c0_15, %c0_16, %c0_17] : memref<4x16x128xf32, #tpu.memory_space<vmem>>, vector<1x16x128xf32>
    %26 = vector.shape_cast %25 : vector<1x16x128xf32> to vector<16x128xf32>
    %27 = vector.shape_cast %24 : vector<16x128xf32> to vector<1x16x128xf32>
    tpu.vector_store %arg6[%c0_15, %c0_16, %c0_17], %27 {strides = array<i32>} : memref<4x16x128xf32, #tpu.memory_space<vmem>>, vector<1x16x128xf32>,
    %cst_18 = arith.constant dense<0.000000e+00> : vector<128xf32>
    %28 = vector.multi_reduction <add>, %19, %cst_18 [0] : vector<8x128xf32> to vector<128xf32>
    %29 = vector.shape_cast %28 : vector<128xf32> to vector<1x128xf32>
    %30 = arith.addf %1, %29 : vector<1x128xf32>
    %31 = vector.extract_strided_slice %24 {offsets = [8, 0], sizes = [8, 128], strides = [1, 1]} : vector<16x128xf32> to vector<8x128xf32>
    %32 = vector.extract_strided_slice %24 {offsets = [0, 0], sizes = [8, 128], strides = [1, 1]} : vector<16x128xf32> to vector<8x128xf32>
    %c1 = arith.constant 1 : index
    %c0_19 = arith.constant 0 : index
    %c0_20 = arith.constant 0 : index
    %33 = vector.load %arg2[%c1, %c0_19, %c0_20] : memref<4x32x8xf32, #tpu.memory_space<vmem>>, vector<1x32x8xf32>
    %34 = vector.shape_cast %33 : vector<1x32x8xf32> to vector<32x8xf32>
    %cst_21 = arith.constant dense<0.000000e+00> : vector<32x128xf32>
    %35 = tpu.matmul %34, %31, %cst_21 {dimension_numbers = #tpu.dot_dimension_numbers<[1], [0], [0], [1], [0, 0, 1, 1], [], []>} : vector<32x8xf32>, vector<8x128xf32>, vector<32x128xf32> -> vector<32x128xf32>
    %c1_22 = arith.constant 1 : index
    %c0_23 = arith.constant 0 : index
    %c0_24 = arith.constant 0 : index
    %36 = vector.load %arg3[%c1_22, %c0_23, %c0_24] : memref<4x32x1xf32, #tpu.memory_space<vmem>>, vector<1x32x1xf32>
    %37 = vector.shape_cast %36 : vector<1x32x1xf32> to vector<32x1xf32>
    %38 = vector.broadcast %37 : vector<32x1xf32> to vector<32x128xf32>
    %39 = arith.addf %35, %38 : vector<32x128xf32>
    %40 = math.tanh %39 : vector<32x128xf32>
    %c1_25 = arith.constant 1 : index
    %c0_26 = arith.constant 0 : index
    %c0_27 = arith.constant 0 : index
    %41 = vector.load %arg4[%c1_25, %c0_26, %c0_27] : memref<4x16x32xf32, #tpu.memory_space<vmem>>, vector<1x16x32xf32>
    %42 = vector.shape_cast %41 : vector<1x16x32xf32> to vector<16x32xf32>
    %cst_28 = arith.constant dense<0.000000e+00> : vector<16x128xf32>
    %43 = tpu.matmul %42, %40, %cst_28 {dimension_numbers = #tpu.dot_dimension_numbers<[1], [0], [0], [1], [0, 0, 1, 1], [], []>} : vector<16x32xf32>, vector<32x128xf32>, vector<16x128xf32> -> vector<16x128xf32>
    %c1_29 = arith.constant 1 : index
    %c0_30 = arith.constant 0 : index
    %c0_31 = arith.constant 0 : index
    %44 = vector.load %arg5[%c1_29, %c0_30, %c0_31] : memref<4x16x1xf32, #tpu.memory_space<vmem>>, vector<1x16x1xf32>
    %45 = vector.shape_cast %44 : vector<1x16x1xf32> to vector<16x1xf32>
    %46 = vector.broadcast %45 : vector<16x1xf32> to vector<16x128xf32>
    %47 = arith.addf %43, %46 : vector<16x128xf32>
    %48 = vector.extract_strided_slice %47 {offsets = [0, 0], sizes = [8, 128], strides = [1, 1]} : vector<16x128xf32> to vector<8x128xf32>
    %49 = vector.extract_strided_slice %47 {offsets = [8, 0], sizes = [8, 128], strides = [1, 1]} : vector<16x128xf32> to vector<8x128xf32>
    %50 = math.exp %48 : vector<8x128xf32>
    %51 = arith.mulf %32, %50 : vector<8x128xf32>
    %52 = arith.addf %51, %49 : vector<8x128xf32>
    %53 = tpu.concatenate %52, %31 in 0 : vector<8x128xf32>, vector<8x128xf32> -> vector<16x128xf32>
    %c1_32 = arith.constant 1 : index
    %c0_33 = arith.constant 0 : index
    %c0_34 = arith.constant 0 : index
    %54 = vector.load %arg6[%c1_32, %c0_33, %c0_34] : memref<4x16x128xf32, #tpu.memory_space<vmem>>, vector<1x16x128xf32>
    %55 = vector.shape_cast %54 : vector<1x16x128xf32> to vector<16x128xf32>
    %56 = vector.shape_cast %53 : vector<16x128xf32> to vector<1x16x128xf32>
    tpu.vector_store %arg6[%c1_32, %c0_33, %c0_34], %56 {strides = array<i32>} : memref<4x16x128xf32, #tpu.memory_space<vmem>>, vector<1x16x128xf32>,
    %cst_35 = arith.constant dense<0.000000e+00> : vector<128xf32>
    %57 = vector.multi_reduction <add>, %48, %cst_35 [0] : vector<8x128xf32> to vector<128xf32>
    %58 = vector.shape_cast %57 : vector<128xf32> to vector<1x128xf32>
    %59 = arith.addf %30, %58 : vector<1x128xf32>
    %60 = vector.extract_strided_slice %53 {offsets = [0, 0], sizes = [8, 128], strides = [1, 1]} : vector<16x128xf32> to vector<8x128xf32>
    %61 = vector.extract_strided_slice %53 {offsets = [8, 0], sizes = [8, 128], strides = [1, 1]} : vector<16x128xf32> to vector<8x128xf32>
    %c2 = arith.constant 2 : index
    %c0_36 = arith.constant 0 : index
    %c0_37 = arith.constant 0 : index
    %62 = vector.load %arg2[%c2, %c0_36, %c0_37] : memref<4x32x8xf32, #tpu.memory_space<vmem>>, vector<1x32x8xf32>
    %63 = vector.shape_cast %62 : vector<1x32x8xf32> to vector<32x8xf32>
    %cst_38 = arith.constant dense<0.000000e+00> : vector<32x128xf32>
    %64 = tpu.matmul %63, %60, %cst_38 {dimension_numbers = #tpu.dot_dimension_numbers<[1], [0], [0], [1], [0, 0, 1, 1], [], []>} : vector<32x8xf32>, vector<8x128xf32>, vector<32x128xf32> -> vector<32x128xf32>
    %c2_39 = arith.constant 2 : index
    %c0_40 = arith.constant 0 : index
    %c0_41 = arith.constant 0 : index
    %65 = vector.load %arg3[%c2_39, %c0_40, %c0_41] : memref<4x32x1xf32, #tpu.memory_space<vmem>>, vector<1x32x1xf32>
    %66 = vector.shape_cast %65 : vector<1x32x1xf32> to vector<32x1xf32>
    %67 = vector.broadcast %66 : vector<32x1xf32> to vector<32x128xf32>
    %68 = arith.addf %64, %67 : vector<32x128xf32>
    %69 = math.tanh %68 : vector<32x128xf32>
    %c2_42 = arith.constant 2 : index
    %c0_43 = arith.constant 0 : index
    %c0_44 = arith.constant 0 : index
    %70 = vector.load %arg4[%c2_42, %c0_43, %c0_44] : memref<4x16x32xf32, #tpu.memory_space<vmem>>, vector<1x16x32xf32>
    %71 = vector.shape_cast %70 : vector<1x16x32xf32> to vector<16x32xf32>
    %cst_45 = arith.constant dense<0.000000e+00> : vector<16x128xf32>
    %72 = tpu.matmul %71, %69, %cst_45 {dimension_numbers = #tpu.dot_dimension_numbers<[1], [0], [0], [1], [0, 0, 1, 1], [], []>} : vector<16x32xf32>, vector<32x128xf32>, vector<16x128xf32> -> vector<16x128xf32>
    %c2_46 = arith.constant 2 : index
    %c0_47 = arith.constant 0 : index
    %c0_48 = arith.constant 0 : index
    %73 = vector.load %arg5[%c2_46, %c0_47, %c0_48] : memref<4x16x1xf32, #tpu.memory_space<vmem>>, vector<1x16x1xf32>
    %74 = vector.shape_cast %73 : vector<1x16x1xf32> to vector<16x1xf32>
    %75 = vector.broadcast %74 : vector<16x1xf32> to vector<16x128xf32>
    %76 = arith.addf %72, %75 : vector<16x128xf32>
    %77 = vector.extract_strided_slice %76 {offsets = [0, 0], sizes = [8, 128], strides = [1, 1]} : vector<16x128xf32> to vector<8x128xf32>
    %78 = vector.extract_strided_slice %76 {offsets = [8, 0], sizes = [8, 128], strides = [1, 1]} : vector<16x128xf32> to vector<8x128xf32>
    %79 = math.exp %77 : vector<8x128xf32>
    %80 = arith.mulf %61, %79 : vector<8x128xf32>
    %81 = arith.addf %80, %78 : vector<8x128xf32>
    %82 = tpu.concatenate %60, %81 in 0 : vector<8x128xf32>, vector<8x128xf32> -> vector<16x128xf32>
    %c2_49 = arith.constant 2 : index
    %c0_50 = arith.constant 0 : index
    %c0_51 = arith.constant 0 : index
    %83 = vector.load %arg6[%c2_49, %c0_50, %c0_51] : memref<4x16x128xf32, #tpu.memory_space<vmem>>, vector<1x16x128xf32>
    %84 = vector.shape_cast %83 : vector<1x16x128xf32> to vector<16x128xf32>
    %85 = vector.shape_cast %82 : vector<16x128xf32> to vector<1x16x128xf32>
    tpu.vector_store %arg6[%c2_49, %c0_50, %c0_51], %85 {strides = array<i32>} : memref<4x16x128xf32, #tpu.memory_space<vmem>>, vector<1x16x128xf32>,
    %cst_52 = arith.constant dense<0.000000e+00> : vector<128xf32>
    %86 = vector.multi_reduction <add>, %77, %cst_52 [0] : vector<8x128xf32> to vector<128xf32>
    %87 = vector.shape_cast %86 : vector<128xf32> to vector<1x128xf32>
    %88 = arith.addf %59, %87 : vector<1x128xf32>
    %89 = vector.extract_strided_slice %82 {offsets = [8, 0], sizes = [8, 128], strides = [1, 1]} : vector<16x128xf32> to vector<8x128xf32>
    %90 = vector.extract_strided_slice %82 {offsets = [0, 0], sizes = [8, 128], strides = [1, 1]} : vector<16x128xf32> to vector<8x128xf32>
    %c3 = arith.constant 3 : index
    %c0_53 = arith.constant 0 : index
    %c0_54 = arith.constant 0 : index
    %91 = vector.load %arg2[%c3, %c0_53, %c0_54] : memref<4x32x8xf32, #tpu.memory_space<vmem>>, vector<1x32x8xf32>
    %92 = vector.shape_cast %91 : vector<1x32x8xf32> to vector<32x8xf32>
    %cst_55 = arith.constant dense<0.000000e+00> : vector<32x128xf32>
    %93 = tpu.matmul %92, %89, %cst_55 {dimension_numbers = #tpu.dot_dimension_numbers<[1], [0], [0], [1], [0, 0, 1, 1], [], []>} : vector<32x8xf32>, vector<8x128xf32>, vector<32x128xf32> -> vector<32x128xf32>
    %c3_56 = arith.constant 3 : index
    %c0_57 = arith.constant 0 : index
    %c0_58 = arith.constant 0 : index
    %94 = vector.load %arg3[%c3_56, %c0_57, %c0_58] : memref<4x32x1xf32, #tpu.memory_space<vmem>>, vector<1x32x1xf32>
    %95 = vector.shape_cast %94 : vector<1x32x1xf32> to vector<32x1xf32>
    %96 = vector.broadcast %95 : vector<32x1xf32> to vector<32x128xf32>
    %97 = arith.addf %93, %96 : vector<32x128xf32>
    %98 = math.tanh %97 : vector<32x128xf32>
    %c3_59 = arith.constant 3 : index
    %c0_60 = arith.constant 0 : index
    %c0_61 = arith.constant 0 : index
    %99 = vector.load %arg4[%c3_59, %c0_60, %c0_61] : memref<4x16x32xf32, #tpu.memory_space<vmem>>, vector<1x16x32xf32>
    %100 = vector.shape_cast %99 : vector<1x16x32xf32> to vector<16x32xf32>
    %cst_62 = arith.constant dense<0.000000e+00> : vector<16x128xf32>
    %101 = tpu.matmul %100, %98, %cst_62 {dimension_numbers = #tpu.dot_dimension_numbers<[1], [0], [0], [1], [0, 0, 1, 1], [], []>} : vector<16x32xf32>, vector<32x128xf32>, vector<16x128xf32> -> vector<16x128xf32>
    %c3_63 = arith.constant 3 : index
    %c0_64 = arith.constant 0 : index
    %c0_65 = arith.constant 0 : index
    %102 = vector.load %arg5[%c3_63, %c0_64, %c0_65] : memref<4x16x1xf32, #tpu.memory_space<vmem>>, vector<1x16x1xf32>
    %103 = vector.shape_cast %102 : vector<1x16x1xf32> to vector<16x1xf32>
    %104 = vector.broadcast %103 : vector<16x1xf32> to vector<16x128xf32>
    %105 = arith.addf %101, %104 : vector<16x128xf32>
    %106 = vector.extract_strided_slice %105 {offsets = [0, 0], sizes = [8, 128], strides = [1, 1]} : vector<16x128xf32> to vector<8x128xf32>
    %107 = vector.extract_strided_slice %105 {offsets = [8, 0], sizes = [8, 128], strides = [1, 1]} : vector<16x128xf32> to vector<8x128xf32>
    %108 = math.exp %106 : vector<8x128xf32>
    %109 = arith.mulf %90, %108 : vector<8x128xf32>
    %110 = arith.addf %109, %107 : vector<8x128xf32>
    %111 = tpu.concatenate %110, %89 in 0 : vector<8x128xf32>, vector<8x128xf32> -> vector<16x128xf32>
    %c3_66 = arith.constant 3 : index
    %c0_67 = arith.constant 0 : index
    %c0_68 = arith.constant 0 : index
    %112 = vector.load %arg6[%c3_66, %c0_67, %c0_68] : memref<4x16x128xf32, #tpu.memory_space<vmem>>, vector<1x16x128xf32>
    %113 = vector.shape_cast %112 : vector<1x16x128xf32> to vector<16x128xf32>
    %114 = vector.shape_cast %111 : vector<16x128xf32> to vector<1x16x128xf32>
    tpu.vector_store %arg6[%c3_66, %c0_67, %c0_68], %114 {strides = array<i32>} : memref<4x16x128xf32, #tpu.memory_space<vmem>>, vector<1x16x128xf32>,
    %cst_69 = arith.constant dense<0.000000e+00> : vector<128xf32>
    %115 = vector.multi_reduction <add>, %106, %cst_69 [0] : vector<8x128xf32> to vector<128xf32>
    %116 = vector.shape_cast %115 : vector<128xf32> to vector<1x128xf32>
    %117 = arith.addf %88, %116 : vector<1x128xf32>
    %c0_70 = arith.constant 0 : index
    %c0_71 = arith.constant 0 : index
    %118 = vector.load %arg7[%c0_70, %c0_71] : memref<1x128xf32, #tpu.memory_space<vmem>>, vector<1x128xf32>
    tpu.vector_store %arg7[%c0_70, %c0_71], %117 {strides = array<i32>} : memref<1x128xf32, #tpu.memory_space<vmem>>, vector<1x128xf32>,
    return
  }
  func.func @transform_0(%arg0: i32) -> (i32, i32) {
    %c0_i32 = arith.constant 0 : i32
    %c0_i32_0 = arith.constant 0 : i32
    return %c0_i32, %arg0 : i32, i32
  }
  func.func @transform_1(%arg0: i32) -> (i32, i32, i32) {
    %c0_i32 = arith.constant 0 : i32
    %c0_i32_0 = arith.constant 0 : i32
    %c0_i32_1 = arith.constant 0 : i32
    %c0_i32_2 = arith.constant 0 : i32
    return %c0_i32, %c0_i32_0, %c0_i32_1 : i32, i32, i32
  }
  func.func @transform_2(%arg0: i32) -> (i32, i32, i32) {
    %c0_i32 = arith.constant 0 : i32
    %c0_i32_0 = arith.constant 0 : i32
    %c0_i32_1 = arith.constant 0 : i32
    %c0_i32_2 = arith.constant 0 : i32
    return %c0_i32, %c0_i32_0, %c0_i32_1 : i32, i32, i32
  }
  func.func @transform_3(%arg0: i32) -> (i32, i32, i32) {
    %c0_i32 = arith.constant 0 : i32
    %c0_i32_0 = arith.constant 0 : i32
    %c0_i32_1 = arith.constant 0 : i32
    %c0_i32_2 = arith.constant 0 : i32
    return %c0_i32, %c0_i32_0, %c0_i32_1 : i32, i32, i32
  }
  func.func @transform_4(%arg0: i32) -> (i32, i32, i32) {
    %c0_i32 = arith.constant 0 : i32
    %c0_i32_0 = arith.constant 0 : i32
    %c0_i32_1 = arith.constant 0 : i32
    %c0_i32_2 = arith.constant 0 : i32
    return %c0_i32, %c0_i32_0, %c0_i32_1 : i32, i32, i32
  }
  func.func @transform_5(%arg0: i32) -> (i32, i32, i32) {
    %c0_i32 = arith.constant 0 : i32
    %c0_i32_0 = arith.constant 0 : i32
    %c0_i32_1 = arith.constant 0 : i32
    return %c0_i32, %c0_i32_0, %arg0 : i32, i32, i32
  }
  func.func @transform_6(%arg0: i32) -> (i32, i32) {
    %c0_i32 = arith.constant 0 : i32
    %c0_i32_0 = arith.constant 0 : i32
    return %c0_i32, %arg0 : i32, i32
  }
}

</mosaic_0001>

<llo_original>
// kernel: tpu_custom_call.1
$region0: #{tpu_custom_call.1}
  #allocation0 [shape = 'u32[]', space=smem, size = 0x4, offset = 0x4, fixed_abs, tag = 'smem constant byte address 0x4 - core index']
  #allocation1 [shape = 'u32[144,128]{1,0:T(1,128)}', space=vmem, size = 0x12000, scoped, tag = 'internal scratch']
  %s0 = inlined_call_operand.vmem [shape: f32[16,256], index: 0, kind: input, shape index: {}]
  %s1 = inlined_call_operand.vmem [shape: f32[4,32,8], index: 1, kind: input, shape index: {}]
  %s2 = inlined_call_operand.vmem [shape: f32[4,32,1], index: 2, kind: input, shape index: {}]
  %s3 = inlined_call_operand.vmem [shape: f32[4,16,32], index: 3, kind: input, shape index: {}]
  %s4 = inlined_call_operand.vmem [shape: f32[4,16,1], index: 4, kind: input, shape index: {}]
  %s5 = inlined_call_operand.hbm [shape: f32[4,16,256], index: 5, kind: output, shape index: {0}]
  %s6 = inlined_call_operand.hbm [shape: f32[1,256], index: 6, kind: output, shape index: {1}]
  %7 = xla_tuple %s5, %s6
  %s8 = sld [smem:[#allocation0]]
  $region99: #{tpu_custom_call.1} parent=0
    _
  %s10 = ssub.s32 1, %s8
  %s11 = scalar_select 0, %s10, %s8
  $region1: #{tpu_custom_call.1} parent=0
    #allocation2 [shape = 'u8[16384]{0}', space=vmem, size = 0x4000, scoped, tag = 'input window, operand 0']
    #allocation3 [shape = 'u8[65536]{0}', space=vmem, size = 0x10000, scoped, tag = 'output window, operand 0']
    #allocation4 [shape = 's32[2]{0}', space=sflag, size = 0x8, scoped, tag = 'scoped memory for tpu_custom_call.1']
    #allocation5 [shape = 'u8[1024]{0}', space=vmem, size = 0x400, scoped, tag = 'output window, operand 1']
    #allocation6 [shape = 's32[2]{0}', space=sflag, size = 0x8, scoped, tag = 'scoped memory for tpu_custom_call.1']
    %12 = vsyncpa [#allocation4], 0
    %s13 = scalar_lea.sflag [#allocation4], 1
    %14 = vsyncpa %s13, 0
    %15 = vsyncpa [#allocation6], 0
    %s16 = scalar_lea.sflag [#allocation6], 1
    %17 = vsyncpa %s16, 0
    loop: start=0, step=1, limit=4
    $region2: #{tpu_custom_call.1} parent=1 // loop_pre_header
      _
    $region3: #{tpu_custom_call.1} parent=1 // loop_header
      %s19 = sphi 0, %s23
      %p20 = scmp.ge.s32.totalorder %s19, 4
      %s29 = sphi 0, %s31
      %s32 = sphi 0, %s29
      %s33 = sphi 0, %s32
      %s49 = sphi 0, %s33
      %s53 = sphi 0, %s53
      %s55 = sphi 0, %s53
      %s56 = sphi 0, %s55
      %s70 = sphi 0, %s56
      %s74 = sphi 0, %s74
      %s76 = sphi 0, %s74
      %s77 = sphi 0, %s76
      %s91 = sphi 0, %s77
      %s95 = sphi 0, %s95
      %s97 = sphi 0, %s95
      %s98 = sphi 0, %s97
      %s112 = sphi 0, %s98
      %s116 = sphi 0, %s116
      %s118 = sphi 0, %s116
      %s119 = sphi 0, %s118
      %s133 = sphi 0, %s119
      %s139 = sphi 0, %s141
      %s142 = sphi 0, %s139
      %s143 = sphi 0, %s142
      %s159 = sphi 0, %s143
      %s165 = sphi 0, %s167
      %s168 = sphi 0, %s165
      %s169 = sphi 0, %s168
      %s185 = sphi 0, %s169
    $region4: #{tpu_custom_call.1} parent=1 // loop_header_branch
      %22 = sbr.rel (%p20) target = $region8
    $region5: #{tpu_custom_call.1} parent=1 // loop_body
      %s24 = ssub.s32 %s19, 1
      %s25 = ssub.s32 %s19, 2
      %s26 = sadd.s32 %s19, 1
      %s27 = ssub.s32 %s19, %s26
      %p28 = scmp.eq.s32.totalorder %s27, 0
      %s30 = sadd.s32 %s29, 1
      %s31 = scalar_select %p28, %s29, %s30
      %p34 = pneg %p28
      %p35 = scmp.eq.s32.totalorder %s19, 1
      %p36 = por %p34, %p35
      %p37 = scmp.ne.s32.totalorder %s29, %s32
      %p38 = scmp.eq.s32.totalorder %s19, 0
      %p39 = por %p37, %p38
      %p40 = scmp.ne.s32.totalorder %s29, %s32
      %p41 = scmp.eq.s32.totalorder %s24, 1
      %p42 = por %p40, %p41
      %p43 = scmp.ne.s32.totalorder %s32, %s33
      %p44 = scmp.eq.s32.totalorder %s24, 0
      %p45 = por %p43, %p44
      %p46 = scmp.ne.s32.totalorder %s32, %s33
      %p47 = scmp.eq.s32.totalorder %s25, 1
      %p48 = por %p46, %p47
      %p50 = scmp.ne.s32.totalorder %s33, %s49
      %p51 = scmp.eq.s32.totalorder %s25, 0
      %p52 = por %p50, %p51
      %s54 = sadd.s32 %s53, 1
      %p57 = scmp.eq.s32.totalorder %s19, 1
      %p58 = scmp.ne.s32.totalorder %s53, %s55
      %p59 = scmp.eq.s32.totalorder %s19, 0
      %p60 = por %p58, %p59
      %p61 = scmp.ne.s32.totalorder %s53, %s55
      %p62 = scmp.eq.s32.totalorder %s24, 1
      %p63 = por %p61, %p62
      %p64 = scmp.ne.s32.totalorder %s55, %s56
      %p65 = scmp.eq.s32.totalorder %s24, 0
      %p66 = por %p64, %p65
      %p67 = scmp.ne.s32.totalorder %s55, %s56
      %p68 = scmp.eq.s32.totalorder %s25, 1
      %p69 = por %p67, %p68
      %p71 = scmp.ne.s32.totalorder %s56, %s70
      %p72 = scmp.eq.s32.totalorder %s25, 0
      %p73 = por %p71, %p72
      %s75 = sadd.s32 %s74, 1
      %p78 = scmp.eq.s32.totalorder %s19, 1
      %p79 = scmp.ne.s32.totalorder %s74, %s76
      %p80 = scmp.eq.s32.totalorder %s19, 0
      %p81 = por %p79, %p80
      %p82 = scmp.ne.s32.totalorder %s74, %s76
      %p83 = scmp.eq.s32.totalorder %s24, 1
      %p84 = por %p82, %p83
      %p85 = scmp.ne.s32.totalorder %s76, %s77
      %p86 = scmp.eq.s32.totalorder %s24, 0
      %p87 = por %p85, %p86
      %p88 = scmp.ne.s32.totalorder %s76, %s77
      %p89 = scmp.eq.s32.totalorder %s25, 1
      %p90 = por %p88, %p89
      %p92 = scmp.ne.s32.totalorder %s77, %s91
      %p93 = scmp.eq.s32.totalorder %s25, 0
      %p94 = por %p92, %p93
      %s96 = sadd.s32 %s95, 1
      %p99 = scmp.eq.s32.totalorder %s19, 1
      %p100 = scmp.ne.s32.totalorder %s95, %s97
      %p101 = scmp.eq.s32.totalorder %s19, 0
      %p102 = por %p100, %p101
      %p103 = scmp.ne.s32.totalorder %s95, %s97
      %p104 = scmp.eq.s32.totalorder %s24, 1
      %p105 = por %p103, %p104
      %p106 = scmp.ne.s32.totalorder %s97, %s98
      %p107 = scmp.eq.s32.totalorder %s24, 0
      %p108 = por %p106, %p107
      %p109 = scmp.ne.s32.totalorder %s97, %s98
      %p110 = scmp.eq.s32.totalorder %s25, 1
      %p111 = por %p109, %p110
      %p113 = scmp.ne.s32.totalorder %s98, %s112
      %p114 = scmp.eq.s32.totalorder %s25, 0
      %p115 = por %p113, %p114
      %s117 = sadd.s32 %s116, 1
      %p120 = scmp.eq.s32.totalorder %s19, 1
      %p121 = scmp.ne.s32.totalorder %s116, %s118
      %p122 = scmp.eq.s32.totalorder %s19, 0
      %p123 = por %p121, %p122
      %p124 = scmp.ne.s32.totalorder %s116, %s118
      %p125 = scmp.eq.s32.totalorder %s24, 1
      %p126 = por %p124, %p125
      %p127 = scmp.ne.s32.totalorder %s118, %s119
      %p128 = scmp.eq.s32.totalorder %s24, 0
      %p129 = por %p127, %p128
      %p130 = scmp.ne.s32.totalorder %s118, %s119
      %p131 = scmp.eq.s32.totalorder %s25, 1
      %p132 = por %p130, %p131
      %p134 = scmp.ne.s32.totalorder %s119, %s133
      %p135 = scmp.eq.s32.totalorder %s25, 0
      %p136 = por %p134, %p135
      %s137 = ssub.s32 %s19, %s26
      %p138 = scmp.eq.s32.totalorder %s137, 0
      %s140 = sadd.s32 %s139, 1
      %s141 = scalar_select %p138, %s139, %s140
      %p144 = pneg %p138
      %p145 = scmp.eq.s32.totalorder %s19, 1
      %p146 = por %p144, %p145
      %p147 = scmp.ne.s32.totalorder %s139, %s142
      %p148 = scmp.eq.s32.totalorder %s19, 0
      %p149 = por %p147, %p148
      %p150 = scmp.ne.s32.totalorder %s139, %s142
      %p151 = scmp.eq.s32.totalorder %s24, 1
      %p152 = por %p150, %p151
      %p153 = scmp.ne.s32.totalorder %s142, %s143
      %p154 = scmp.eq.s32.totalorder %s24, 0
      %p155 = por %p153, %p154
      %p156 = scmp.ne.s32.totalorder %s142, %s143
      %p157 = scmp.eq.s32.totalorder %s25, 1
      %p158 = por %p156, %p157
      %p160 = scmp.ne.s32.totalorder %s143, %s159
      %p161 = scmp.eq.s32.totalorder %s25, 0
      %p162 = por %p160, %p161
      %s163 = ssub.s32 %s19, %s26
      %p164 = scmp.eq.s32.totalorder %s163, 0
      %s166 = sadd.s32 %s165, 1
      %s167 = scalar_select %p164, %s165, %s166
      %p170 = pneg %p164
      %p171 = scmp.eq.s32.totalorder %s19, 1
      %p172 = por %p170, %p171
      %p173 = scmp.ne.s32.totalorder %s165, %s168
      %p174 = scmp.eq.s32.totalorder %s19, 0
      %p175 = por %p173, %p174
      %p176 = scmp.ne.s32.totalorder %s165, %s168
      %p177 = scmp.eq.s32.totalorder %s24, 1
      %p178 = por %p176, %p177
      %p179 = scmp.ne.s32.totalorder %s168, %s169
      %p180 = scmp.eq.s32.totalorder %s24, 0
      %p181 = por %p179, %p180
      %p182 = scmp.ne.s32.totalorder %s168, %s169
      %p183 = scmp.eq.s32.totalorder %s25, 1
      %p184 = por %p182, %p183
      %p186 = scmp.ne.s32.totalorder %s169, %s185
      %p187 = scmp.eq.s32.totalorder %s25, 0
      %p188 = por %p186, %p187
      %p189 = scmp.le.s32.totalorder 1, %s19
      %p190 = scmp.lt.s32.totalorder %s19, 3
      %p191 = pnand %p189, %p190
      %p192 = pneg %p191
      // Predicated region
      $region9: #{tpu_custom_call.1} parent=5 // pred_check
        _
      $region10: #{tpu_custom_call.1} parent=5 // pred_check_branch
        %194 = sbr.rel (%p191) target = $region12
      $region11: #{tpu_custom_call.1} parent=5 // pred_region
        %s195 = ssub.s32 %s19, 1
        // Predicated region
        $region13: #{tpu_custom_call.1} parent=11 // pred_check
          %p196 = pneg %p66
        $region14: #{tpu_custom_call.1} parent=11 // pred_check_branch
          %198 = sbr.rel (%p196) target = $region16
        $region15: #{tpu_custom_call.1} parent=11 // pred_region
          _
        $region16: #{tpu_custom_call.1} parent=11 // pred_fallthru
          _
        // Predicated region
        $region17: #{tpu_custom_call.1} parent=11 // pred_check
          %p199 = pneg %p87
        $region18: #{tpu_custom_call.1} parent=11 // pred_check_branch
          %201 = sbr.rel (%p199) target = $region20
        $region19: #{tpu_custom_call.1} parent=11 // pred_region
          _
        $region20: #{tpu_custom_call.1} parent=11 // pred_fallthru
          _
        // Predicated region
        $region21: #{tpu_custom_call.1} parent=11 // pred_check
          %p202 = pneg %p108
        $region22: #{tpu_custom_call.1} parent=11 // pred_check_branch
          %204 = sbr.rel (%p202) target = $region24
        $region23: #{tpu_custom_call.1} parent=11 // pred_region
          _
        $region24: #{tpu_custom_call.1} parent=11 // pred_fallthru
          _
        // Predicated region
        $region25: #{tpu_custom_call.1} parent=11 // pred_check
          %p205 = pneg %p129
        $region26: #{tpu_custom_call.1} parent=11 // pred_check_branch
          %207 = sbr.rel (%p205) target = $region28
        $region27: #{tpu_custom_call.1} parent=11 // pred_region
          _
        $region28: #{tpu_custom_call.1} parent=11 // pred_fallthru
          _
      $region12: #{tpu_custom_call.1} parent=5 // pred_fallthru
        _
      %p208 = scmp.lt.s32.totalorder %s19, 2
      // Predicated region
      $region29: #{tpu_custom_call.1} parent=5 // pred_check
        %p209 = pneg %p208
      $region30: #{tpu_custom_call.1} parent=5 // pred_check_branch
        %211 = sbr.rel (%p209) target = $region32
      $region31: #{tpu_custom_call.1} parent=5 // pred_region
        // Predicated region
        $region33: #{tpu_custom_call.1} parent=31 // pred_check
          %p212 = pneg %p39
        $region34: #{tpu_custom_call.1} parent=31 // pred_check_branch
          %214 = sbr.rel (%p212) target = $region36
        $region35: #{tpu_custom_call.1} parent=31 // pred_region
          %s215 = sand.u32 %s29, 1
          %s216 = sand.u32 %s29, 1
          %s217 = smul.addr %s216, 16
          %s218 = scalar_lea.vmem [#allocation2], %s217
          %s219 = smul.addr %s19, 8
          %s220 = scalar_lea.vmem %s0, %s219
          // Predicated region
          $region37: #{tpu_custom_call.1} parent=35 // pred_check
            _
          $region38: #{tpu_custom_call.1} parent=35 // pred_check_branch
            %222 = sbr.rel (0) target = $region40
          $region39: #{tpu_custom_call.1} parent=35 // pred_region
            // Predicated region
            $region41: #{tpu_custom_call.1} parent=39 // pred_check
              _
            $region42: #{tpu_custom_call.1} parent=39 // pred_check_branch
              %224 = sbr.rel (0) target = $region44
            $region43: #{tpu_custom_call.1} parent=39 // pred_region
              // Predicated region
              $region56: #{tpu_custom_call.1} parent=43 // pred_check
                _
              $region57: #{tpu_custom_call.1} parent=43 // pred_check_branch
                %241 = sbr.rel (0) target = $region59
              $region58: #{tpu_custom_call.1} parent=43 // pred_region
                loop: start=0, step=1, limit=1
                $region60: #{tpu_custom_call.1} parent=58 // loop_pre_header
                  _
                $region61: #{tpu_custom_call.1} parent=58 // loop_header
                  %s243 = sphi 0, %s247
                  %p244 = scmp.ge.s32.totalorder %s243, 1
                  %s248 = sphi %s220, %s220
                  %s249 = sphi %s218, %s218
                $region62: #{tpu_custom_call.1} parent=58 // loop_header_branch
                  %246 = sbr.rel (%p244) target = $region66
                $region63: #{tpu_custom_call.1} parent=58 // loop_body
                  %v250 = vld [vmem:[%s248] sm:$0xff]
                  %251 = vst [vmem:[%s249] sm:$0xff] %v250
                  %v252 = vld [vmem:[%s248 + $0x10] sm:$0xff]
                  %253 = vst [vmem:[%s249 + $0x8] sm:$0xff] %v252
                $region64: #{tpu_custom_call.1} parent=58 // loop_footer
                  %s247 = sadd.s32 1, %s243
                $region65: #{tpu_custom_call.1} parent=58 // loop_footer_branch
                  %242 = sbr.rel target = $region61
                $region66: #{tpu_custom_call.1} parent=58 // loop_exit
                  _
              $region59: #{tpu_custom_call.1} parent=43 // pred_fallthru
                _
              // Predicated region
              $region67: #{tpu_custom_call.1} parent=43 // pred_check
                _
              $region68: #{tpu_custom_call.1} parent=43 // pred_check_branch
                %255 = sbr.rel target = $region70
              $region69: #{tpu_custom_call.1} parent=43 // pred_region
                _
              $region70: #{tpu_custom_call.1} parent=43 // pred_fallthru
                _
            $region44: #{tpu_custom_call.1} parent=39 // pred_fallthru
              _
            // Predicated region
            $region45: #{tpu_custom_call.1} parent=39 // pred_check
              _
            $region46: #{tpu_custom_call.1} parent=39 // pred_check_branch
              %226 = sbr.rel target = $region48
            $region47: #{tpu_custom_call.1} parent=39 // pred_region
              loop: start=0, step=1, limit=1
              $region49: #{tpu_custom_call.1} parent=47 // loop_pre_header
                _
              $region50: #{tpu_custom_call.1} parent=47 // loop_header
                %s229 = sphi 0, %s233
                %p230 = scmp.ge.s32.totalorder %s229, 1
                %s234 = sphi %s220, %s220
                %s235 = sphi %s218, %s218
              $region51: #{tpu_custom_call.1} parent=47 // loop_header_branch
                %232 = sbr.rel (%p230) target = $region55
              $region52: #{tpu_custom_call.1} parent=47 // loop_body
                %v236 = vld [vmem:[%s234] sm:$0xff]
                %237 = vst [vmem:[%s235] sm:$0xff] %v236
                %v238 = vld [vmem:[%s234 + $0x10] sm:$0xff]
                %239 = vst [vmem:[%s235 + $0x8] sm:$0xff] %v238
              $region53: #{tpu_custom_call.1} parent=47 // loop_footer
                %s233 = sadd.s32 1, %s229
              $region54: #{tpu_custom_call.1} parent=47 // loop_footer_branch
                %228 = sbr.rel target = $region50
              $region55: #{tpu_custom_call.1} parent=47 // loop_exit
                _
            $region48: #{tpu_custom_call.1} parent=39 // pred_fallthru
              _
          $region40: #{tpu_custom_call.1} parent=35 // pred_fallthru
            _
          %256 = vnop
        $region36: #{tpu_custom_call.1} parent=31 // pred_fallthru
          _
      $region32: #{tpu_custom_call.1} parent=5 // pred_fallthru
        _
      %p257 = scmp.le.s32.totalorder 1, %s19
      %p258 = scmp.lt.s32.totalorder %s19, 3
      %p259 = pnand %p257, %p258
      %p260 = pneg %p259
      // Predicated region
      $region71: #{tpu_custom_call.1} parent=5 // pred_check
        _
      $region72: #{tpu_custom_call.1} parent=5 // pred_check_branch
        %262 = sbr.rel (%p259) target = $region74
      $region73: #{tpu_custom_call.1} parent=5 // pred_region
        %s263 = ssub.s32 %s19, 1
        %s264 = sand.u32 %s32, 1
        %s265 = sand.u32 %s32, 1
        %s266 = smul.addr %s265, 16
        %s267 = scalar_lea.vmem [#allocation2], %s266
        // Predicated region
        $region75: #{tpu_custom_call.1} parent=73 // pred_check
          %p268 = pneg %p45
        $region76: #{tpu_custom_call.1} parent=73 // pred_check_branch
          %270 = sbr.rel (%p268) target = $region78
        $region77: #{tpu_custom_call.1} parent=73 // pred_region
          _
        $region78: #{tpu_custom_call.1} parent=73 // pred_fallthru
          _
        %s271 = sand.u32 %s32, 1
        %s272 = sand.u32 %s32, 1
        %s273 = smul.addr %s272, 16
        %s274 = scalar_lea.vmem [#allocation2], %s273
        %p275 = pneg %p45
        %p276 = pneg %p42
        %p277 = pneg %p66
        %p278 = pneg %p63
        %p279 = pneg %p87
        %p280 = pneg %p84
        %p281 = pneg %p108
        %p282 = pneg %p105
        %p283 = pneg %p129
        %p284 = pneg %p126
        %p285 = pneg %p155
        %p286 = pneg %p152
        %s287 = sand.u32 %s142, 1
        %s288 = scalar_lea.sflag [#allocation4], %s287
        %s289 = sand.u32 %s142, 1
        %s290 = smul.addr %s289, 64
        %s291 = scalar_lea.vmem [#allocation3], %s290
        %p292 = pneg %p181
        %p293 = pneg %p178
        %s294 = sand.u32 %s168, 1
        %s295 = scalar_lea.sflag [#allocation6], %s294
        %s296 = sand.u32 %s168, 1
        %s297 = scalar_lea.vmem [#allocation5], %s296
        %v298 = vld [vmem:[%s267] sm:$0xff]
        %v299 = vld [vmem:[%s267 + $0x8] sm:$0xff]
        %v300 = vld [vmem:[%s1] sm:$0xff]
        %v301 = vld [vmem:[%s1 + $0x8] sm:$0xff]
        %v302 = vld [vmem:[%s1 + $0x10] sm:$0xff]
        %v303 = vld [vmem:[%s1 + $0x18] sm:$0xff]
        %v304 = vld [vmem:[%s2] sm:$0xff]
        %v305 = vld [vmem:[%s2 + $0x8] sm:$0xff]
        %v306 = vld [vmem:[%s2 + $0x10] sm:$0xff]
        %v307 = vld [vmem:[%s2 + $0x18] sm:$0xff]
        %309 = vset.pattern.permute.xlu0 0
        %310 = vperm.xlu0 %309, %v304
        %v311 = vpop.permute.xlu0 %310
        %314 = vset.pattern.permute.xlu0 0
        %315 = vperm.xlu0 %314, %v305
        %v316 = vpop.permute.xlu0 %315
        %319 = vset.pattern.permute.xlu0 0
        %320 = vperm.xlu0 %319, %v306
        %v321 = vpop.permute.xlu0 %320
        %324 = vset.pattern.permute.xlu0 0
        %325 = vperm.xlu0 %324, %v307
        %v326 = vpop.permute.xlu0 %325
        %vm328 = vcmask 64512
        %v330 = vsel %vm328, %v300, 0
        %v333 = vsel %vm328, %v301, 0
        %v336 = vsel %vm328, %v302, 0
        %v339 = vsel %vm328, %v303, 0
        %341 = vmatprep.subr.mxu0 0.0
        %342 = vmatpush1.msra.mxu0 %v298
        %343 = vmatprep.subr.mxu0 0.0
        %344 = vmatpush1.msra.mxu0 0.0
        %345 = vmatprep.subr.mxu0 0.0
        %346 = vmatpush1.msra.mxu0 0.0
        %347 = vmatprep.subr.mxu0 0.0
        %348 = vmatpush1.msra.mxu0 0.0
        %349 = vmatprep.subr.mxu0 0.0
        %350 = vmatpush1.msra.mxu0 0.0
        %351 = vmatprep.subr.mxu0 0.0
        %352 = vmatpush1.msra.mxu0 0.0
        %353 = vmatprep.subr.mxu0 0.0
        %354 = vmatpush1.msra.mxu0 0.0
        %355 = vmatprep.subr.mxu0 0.0
        %356 = vmatpush1.msra.mxu0 0.0
        %357 = vmatprep.subr.mxu0 0.0
        %358 = vmatpush1.msra.mxu0 0.0
        %359 = vmatprep.subr.mxu0 0.0
        %360 = vmatpush1.msra.mxu0 0.0
        %361 = vmatprep.subr.mxu0 0.0
        %362 = vmatpush1.msra.mxu0 0.0
        %363 = vmatprep.subr.mxu0 0.0
        %364 = vmatpush1.msra.mxu0 0.0
        %365 = vmatprep.subr.mxu0 0.0
        %366 = vmatpush1.msra.mxu0 0.0
        %367 = vmatprep.subr.mxu0 0.0
        %368 = vmatpush1.msra.mxu0 0.0
        %369 = vmatprep.subr.mxu0 0.0
        %370 = vmatpush1.msra.mxu0 0.0
        %371 = vmatprep.subr.mxu0 0.0
        %372 = vmatpush1.msra.mxu0 0.0
        %373 = vmatprep.subr.mxu0 0.0
        %374 = vmatpush1.msra.mxu0 0.0
        %375 = vmatprep.subr.mxu0 0.0
        %376 = vmatpush1.msra.mxu0 0.0
        %377 = vmatprep.subr.mxu0 0.0
        %378 = vmatpush1.msra.mxu0 0.0
        %379 = vmatprep.subr.mxu0 0.0
        %380 = vmatpush1.msra.mxu0 0.0
        %381 = vmatprep.subr.mxu0 0.0
        %382 = vmatpush1.msra.mxu0 0.0
        %383 = vmatprep.subr.mxu0 0.0
        %384 = vmatpush1.msra.mxu0 0.0
        %385 = vmatprep.subr.mxu0 0.0
        %386 = vmatpush1.msra.mxu0 0.0
        %387 = vmatprep.subr.mxu0 0.0
        %388 = vmatpush1.msra.mxu0 0.0
        %389 = vmatprep.subr.mxu0 0.0
        %390 = vmatpush1.msra.mxu0 0.0
        %391 = vmatprep.subr.mxu0 0.0
        %392 = vmatpush1.msra.mxu0 0.0
        %393 = vmatprep.subr.mxu0 0.0
        %394 = vmatpush1.msra.mxu0 0.0
        %395 = vmatprep.subr.mxu0 0.0
        %396 = vmatpush1.msra.mxu0 0.0
        %397 = vmatprep.subr.mxu0 0.0
        %398 = vmatpush1.msra.mxu0 0.0
        %399 = vmatprep.subr.mxu0 0.0
        %400 = vmatpush1.msra.mxu0 0.0
        %401 = vmatprep.subr.mxu0 0.0
        %402 = vmatpush1.msra.mxu0 0.0
        %403 = vmatprep.subr.mxu0 0.0
        %404 = vmatpush1.msra.mxu0 0.0
        %405 = vmatprep.mubr.f32.mxu0 0.0
        %406 = vmatmul.mubr.f32.gmra.mrb[0].mxu0 %v330
        %v407 = vpop.f32.mrb[0].mxu0
        %v408 = vadd.f32 %v311, %v407
        %v409 = vpop.f32.mrb[0].mxu0
        %410 = vmatprep.mubr.f32.mxu0 0.0
        %411 = vmatmul.mubr.f32.gmra.mrb[0].mxu0 %v333
        %v412 = vpop.f32.mrb[0].mxu0
        %v413 = vadd.f32 %v316, %v412
        %v414 = vpop.f32.mrb[0].mxu0
        %415 = vmatprep.mubr.f32.mxu0 0.0
        %416 = vmatmul.mubr.f32.gmra.mrb[0].mxu0 %v336
        %v417 = vpop.f32.mrb[0].mxu0
        %v418 = vadd.f32 %v321, %v417
        %v419 = vpop.f32.mrb[0].mxu0
        %420 = vmatprep.mubr.f32.mxu0 0.0
        %421 = vmatmul.mubr.f32.gmra.mrb[0].mxu0 %v339
        %v422 = vpop.f32.mrb[0].mxu0
        %v423 = vadd.f32 %v326, %v422
        %v424 = vpop.f32.mrb[0].mxu0
        %425 = vdwg.mxu0
        %v426 = vtanh.pop %v408
        %v427 = vtanh.pop %v413
        %v428 = vtanh.pop %v418
        %v429 = vtanh.pop %v423
        %v430 = vld [vmem:[%s3] sm:$0xff]
        %v431 = vld [vmem:[%s3 + $0x8] sm:$0xff]
        %v432 = vld [vmem:[%s4] sm:$0xff]
        %v433 = vld [vmem:[%s4 + $0x8] sm:$0xff]
        %435 = vset.pattern.permute.xlu0 0
        %436 = vperm.xlu0 %435, %v432
        %v437 = vpop.permute.xlu0 %436
        %440 = vset.pattern.permute.xlu0 0
        %441 = vperm.xlu0 %440, %v433
        %v442 = vpop.permute.xlu0 %441
        %vm444 = vcmask 261120
        %v446 = vsel %vm444, %v430, 0
        %v449 = vsel %vm444, %v431, 0
        %451 = vmatprep.subr.mxu0 0.0
        %452 = vmatpush1.msra.mxu0 %v426
        %453 = vmatprep.subr.mxu0 0.0
        %454 = vmatpush1.msra.mxu0 %v427
        %455 = vmatprep.subr.mxu0 0.0
        %456 = vmatpush1.msra.mxu0 %v428
        %457 = vmatprep.subr.mxu0 0.0
        %458 = vmatpush1.msra.mxu0 %v429
        %459 = vmatprep.subr.mxu0 0.0
        %460 = vmatpush1.msra.mxu0 0.0
        %461 = vmatprep.subr.mxu0 0.0
        %462 = vmatpush1.msra.mxu0 0.0
        %463 = vmatprep.subr.mxu0 0.0
        %464 = vmatpush1.msra.mxu0 0.0
        %465 = vmatprep.subr.mxu0 0.0
        %466 = vmatpush1.msra.mxu0 0.0
        %467 = vmatprep.subr.mxu0 0.0
        %468 = vmatpush1.msra.mxu0 0.0
        %469 = vmatprep.subr.mxu0 0.0
        %470 = vmatpush1.msra.mxu0 0.0
        %471 = vmatprep.subr.mxu0 0.0
        %472 = vmatpush1.msra.mxu0 0.0
        %473 = vmatprep.subr.mxu0 0.0
        %474 = vmatpush1.msra.mxu0 0.0
        %475 = vmatprep.subr.mxu0 0.0
        %476 = vmatpush1.msra.mxu0 0.0
        %477 = vmatprep.subr.mxu0 0.0
        %478 = vmatpush1.msra.mxu0 0.0
        %479 = vmatprep.subr.mxu0 0.0
        %480 = vmatpush1.msra.mxu0 0.0
        %481 = vmatprep.subr.mxu0 0.0
        %482 = vmatpush1.msra.mxu0 0.0
        %483 = vmatprep.subr.mxu0 0.0
        %484 = vmatpush1.msra.mxu0 0.0
        %485 = vmatprep.subr.mxu0 0.0
        %486 = vmatpush1.msra.mxu0 0.0
        %487 = vmatprep.subr.mxu0 0.0
        %488 = vmatpush1.msra.mxu0 0.0
        %489 = vmatprep.subr.mxu0 0.0
        %490 = vmatpush1.msra.mxu0 0.0
        %491 = vmatprep.subr.mxu0 0.0
        %492 = vmatpush1.msra.mxu0 0.0
        %493 = vmatprep.subr.mxu0 0.0
        %494 = vmatpush1.msra.mxu0 0.0
        %495 = vmatprep.subr.mxu0 0.0
        %496 = vmatpush1.msra.mxu0 0.0
        %497 = vmatprep.subr.mxu0 0.0
        %498 = vmatpush1.msra.mxu0 0.0
        %499 = vmatprep.subr.mxu0 0.0
        %500 = vmatpush1.msra.mxu0 0.0
        %501 = vmatprep.subr.mxu0 0.0
        %502 = vmatpush1.msra.mxu0 0.0
        %503 = vmatprep.subr.mxu0 0.0
        %504 = vmatpush1.msra.mxu0 0.0
        %505 = vmatprep.subr.mxu0 0.0
        %506 = vmatpush1.msra.mxu0 0.0
        %507 = vmatprep.subr.mxu0 0.0
        %508 = vmatpush1.msra.mxu0 0.0
        %509 = vmatprep.subr.mxu0 0.0
        %510 = vmatpush1.msra.mxu0 0.0
        %511 = vmatprep.subr.mxu0 0.0
        %512 = vmatpush1.msra.mxu0 0.0
        %513 = vmatprep.subr.mxu0 0.0
        %514 = vmatpush1.msra.mxu0 0.0
        %515 = vmatprep.mubr.f32.mxu0 0.0
        %516 = vmatmul.mubr.f32.gmra.mrb[0].mxu0 %v446
        %v517 = vpop.f32.mrb[0].mxu0
        %v518 = vadd.f32 %v437, %v517
        %v519 = vpop.f32.mrb[0].mxu0
        %520 = vmatprep.mubr.f32.mxu0 0.0
        %521 = vmatmul.mubr.f32.gmra.mrb[0].mxu0 %v449
        %v522 = vpop.f32.mrb[0].mxu0
        %v523 = vadd.f32 %v442, %v522
        %v524 = vpop.f32.mrb[0].mxu0
        %525 = vdwg.mxu0
        %v526 = vmul.f32 %v518, 1.442695
        %v527 = vpow.pop %v526
        %v528 = vmul.f32 %v299, %v527
        %v529 = vadd.f32 %v528, %v523
        %530 = vst [vmem:[%s291] sm:$0xff] %v298
        %531 = vst [vmem:[%s291 + $0x8] sm:$0xff] %v529
        %v532 = vrot.slane %v518, 4
        %v533 = vadd.f32 %v518, %v532
        %v534 = vrot.slane %v533, 2
        %v535 = vadd.f32 %v533, %v534
        %v536 = vrot.slane %v535, 1
        %v537 = vadd.f32 %v535, %v536
        %v538 = vadd.f32 %v537, 0.0
        %s539 = scalar_lea.vmem %s1, 32
        %v540 = vld [vmem:[%s539] sm:$0xff]
        %v541 = vld [vmem:[%s539 + $0x8] sm:$0xff]
        %v542 = vld [vmem:[%s539 + $0x10] sm:$0xff]
        %v543 = vld [vmem:[%s539 + $0x18] sm:$0xff]
        %s544 = scalar_lea.vmem %s2, 32
        %v545 = vld [vmem:[%s544] sm:$0xff]
        %v546 = vld [vmem:[%s544 + $0x8] sm:$0xff]
        %v547 = vld [vmem:[%s544 + $0x10] sm:$0xff]
        %v548 = vld [vmem:[%s544 + $0x18] sm:$0xff]
        %550 = vset.pattern.permute.xlu0 0
        %551 = vperm.xlu0 %550, %v545
        %v552 = vpop.permute.xlu0 %551
        %555 = vset.pattern.permute.xlu0 0
        %556 = vperm.xlu0 %555, %v546
        %v557 = vpop.permute.xlu0 %556
        %560 = vset.pattern.permute.xlu0 0
        %561 = vperm.xlu0 %560, %v547
        %v562 = vpop.permute.xlu0 %561
        %565 = vset.pattern.permute.xlu0 0
        %566 = vperm.xlu0 %565, %v548
        %v567 = vpop.permute.xlu0 %566
        %v570 = vsel %vm328, %v540, 0
        %v573 = vsel %vm328, %v541, 0
        %v576 = vsel %vm328, %v542, 0
        %v579 = vsel %vm328, %v543, 0
        %581 = vmatprep.subr.mxu0 0.0
        %582 = vmatpush1.msra.mxu0 %v529
        %583 = vmatprep.subr.mxu0 0.0
        %584 = vmatpush1.msra.mxu0 0.0
        %585 = vmatprep.subr.mxu0 0.0
        %586 = vmatpush1.msra.mxu0 0.0
        %587 = vmatprep.subr.mxu0 0.0
        %588 = vmatpush1.msra.mxu0 0.0
        %589 = vmatprep.subr.mxu0 0.0
        %590 = vmatpush1.msra.mxu0 0.0
        %591 = vmatprep.subr.mxu0 0.0
        %592 = vmatpush1.msra.mxu0 0.0
        %593 = vmatprep.subr.mxu0 0.0
        %594 = vmatpush1.msra.mxu0 0.0
        %595 = vmatprep.subr.mxu0 0.0
        %596 = vmatpush1.msra.mxu0 0.0
        %597 = vmatprep.subr.mxu0 0.0
        %598 = vmatpush1.msra.mxu0 0.0
        %599 = vmatprep.subr.mxu0 0.0
        %600 = vmatpush1.msra.mxu0 0.0
        %601 = vmatprep.subr.mxu0 0.0
        %602 = vmatpush1.msra.mxu0 0.0
        %603 = vmatprep.subr.mxu0 0.0
        %604 = vmatpush1.msra.mxu0 0.0
        %605 = vmatprep.subr.mxu0 0.0
        %606 = vmatpush1.msra.mxu0 0.0
        %607 = vmatprep.subr.mxu0 0.0
        %608 = vmatpush1.msra.mxu0 0.0
        %609 = vmatprep.subr.mxu0 0.0
        %610 = vmatpush1.msra.mxu0 0.0
        %611 = vmatprep.subr.mxu0 0.0
        %612 = vmatpush1.msra.mxu0 0.0
        %613 = vmatprep.subr.mxu0 0.0
        %614 = vmatpush1.msra.mxu0 0.0
        %615 = vmatprep.subr.mxu0 0.0
        %616 = vmatpush1.msra.mxu0 0.0
        %617 = vmatprep.subr.mxu0 0.0
        %618 = vmatpush1.msra.mxu0 0.0
        %619 = vmatprep.subr.mxu0 0.0
        %620 = vmatpush1.msra.mxu0 0.0
        %621 = vmatprep.subr.mxu0 0.0
        %622 = vmatpush1.msra.mxu0 0.0
        %623 = vmatprep.subr.mxu0 0.0
        %624 = vmatpush1.msra.mxu0 0.0
        %625 = vmatprep.subr.mxu0 0.0
        %626 = vmatpush1.msra.mxu0 0.0
        %627 = vmatprep.subr.mxu0 0.0
        %628 = vmatpush1.msra.mxu0 0.0
        %629 = vmatprep.subr.mxu0 0.0
        %630 = vmatpush1.msra.mxu0 0.0
        %631 = vmatprep.subr.mxu0 0.0
        %632 = vmatpush1.msra.mxu0 0.0
        %633 = vmatprep.subr.mxu0 0.0
        %634 = vmatpush1.msra.mxu0 0.0
        %635 = vmatprep.subr.mxu0 0.0
        %636 = vmatpush1.msra.mxu0 0.0
        %637 = vmatprep.subr.mxu0 0.0
        %638 = vmatpush1.msra.mxu0 0.0
        %639 = vmatprep.subr.mxu0 0.0
        %640 = vmatpush1.msra.mxu0 0.0
        %641 = vmatprep.subr.mxu0 0.0
        %642 = vmatpush1.msra.mxu0 0.0
        %643 = vmatprep.subr.mxu0 0.0
        %644 = vmatpush1.msra.mxu0 0.0
        %645 = vmatprep.mubr.f32.mxu0 0.0
        %646 = vmatmul.mubr.f32.gmra.mrb[0].mxu0 %v570
        %v647 = vpop.f32.mrb[0].mxu0
        %v648 = vadd.f32 %v552, %v647
        %v649 = vpop.f32.mrb[0].mxu0
        %650 = vmatprep.mubr.f32.mxu0 0.0
        %651 = vmatmul.mubr.f32.gmra.mrb[0].mxu0 %v573
        %v652 = vpop.f32.mrb[0].mxu0
        %v653 = vadd.f32 %v557, %v652
        %v654 = vpop.f32.mrb[0].mxu0
        %655 = vmatprep.mubr.f32.mxu0 0.0
        %656 = vmatmul.mubr.f32.gmra.mrb[0].mxu0 %v576
        %v657 = vpop.f32.mrb[0].mxu0
        %v658 = vadd.f32 %v562, %v657
        %v659 = vpop.f32.mrb[0].mxu0
        %660 = vmatprep.mubr.f32.mxu0 0.0
        %661 = vmatmul.mubr.f32.gmra.mrb[0].mxu0 %v579
        %v662 = vpop.f32.mrb[0].mxu0
        %v663 = vadd.f32 %v567, %v662
        %v664 = vpop.f32.mrb[0].mxu0
        %665 = vdwg.mxu0
        %v666 = vtanh.pop %v648
        %v667 = vtanh.pop %v653
        %v668 = vtanh.pop %v658
        %v669 = vtanh.pop %v663
        %s670 = scalar_lea.vmem %s3, 16
        %v671 = vld [vmem:[%s670] sm:$0xff]
        %v672 = vld [vmem:[%s670 + $0x8] sm:$0xff]
        %s673 = scalar_lea.vmem %s4, 16
        %v674 = vld [vmem:[%s673] sm:$0xff]
        %v675 = vld [vmem:[%s673 + $0x8] sm:$0xff]
        %677 = vset.pattern.permute.xlu0 0
        %678 = vperm.xlu0 %677, %v674
        %v679 = vpop.permute.xlu0 %678
        %682 = vset.pattern.permute.xlu0 0
        %683 = vperm.xlu0 %682, %v675
        %v684 = vpop.permute.xlu0 %683
        %v687 = vsel %vm444, %v671, 0
        %v690 = vsel %vm444, %v672, 0
        %692 = vmatprep.subr.mxu0 0.0
        %693 = vmatpush1.msra.mxu0 %v666
        %694 = vmatprep.subr.mxu0 0.0
        %695 = vmatpush1.msra.mxu0 %v667
        %696 = vmatprep.subr.mxu0 0.0
        %697 = vmatpush1.msra.mxu0 %v668
        %698 = vmatprep.subr.mxu0 0.0
        %699 = vmatpush1.msra.mxu0 %v669
        %700 = vmatprep.subr.mxu0 0.0
        %701 = vmatpush1.msra.mxu0 0.0
        %702 = vmatprep.subr.mxu0 0.0
        %703 = vmatpush1.msra.mxu0 0.0
        %704 = vmatprep.subr.mxu0 0.0
        %705 = vmatpush1.msra.mxu0 0.0
        %706 = vmatprep.subr.mxu0 0.0
        %707 = vmatpush1.msra.mxu0 0.0
        %708 = vmatprep.subr.mxu0 0.0
        %709 = vmatpush1.msra.mxu0 0.0
        %710 = vmatprep.subr.mxu0 0.0
        %711 = vmatpush1.msra.mxu0 0.0
        %712 = vmatprep.subr.mxu0 0.0
        %713 = vmatpush1.msra.mxu0 0.0
        %714 = vmatprep.subr.mxu0 0.0
        %715 = vmatpush1.msra.mxu0 0.0
        %716 = vmatprep.subr.mxu0 0.0
        %717 = vmatpush1.msra.mxu0 0.0
        %718 = vmatprep.subr.mxu0 0.0
        %719 = vmatpush1.msra.mxu0 0.0
        %720 = vmatprep.subr.mxu0 0.0
        %721 = vmatpush1.msra.mxu0 0.0
        %722 = vmatprep.subr.mxu0 0.0
        %723 = vmatpush1.msra.mxu0 0.0
        %724 = vmatprep.subr.mxu0 0.0
        %725 = vmatpush1.msra.mxu0 0.0
        %726 = vmatprep.subr.mxu0 0.0
        %727 = vmatpush1.msra.mxu0 0.0
        %728 = vmatprep.subr.mxu0 0.0
        %729 = vmatpush1.msra.mxu0 0.0
        %730 = vmatprep.subr.mxu0 0.0
        %731 = vmatpush1.msra.mxu0 0.0
        %732 = vmatprep.subr.mxu0 0.0
        %733 = vmatpush1.msra.mxu0 0.0
        %734 = vmatprep.subr.mxu0 0.0
        %735 = vmatpush1.msra.mxu0 0.0
        %736 = vmatprep.subr.mxu0 0.0
        %737 = vmatpush1.msra.mxu0 0.0
        %738 = vmatprep.subr.mxu0 0.0
        %739 = vmatpush1.msra.mxu0 0.0
        %740 = vmatprep.subr.mxu0 0.0
        %741 = vmatpush1.msra.mxu0 0.0
        %742 = vmatprep.subr.mxu0 0.0
        %743 = vmatpush1.msra.mxu0 0.0
        %744 = vmatprep.subr.mxu0 0.0
        %745 = vmatpush1.msra.mxu0 0.0
        %746 = vmatprep.subr.mxu0 0.0
        %747 = vmatpush1.msra.mxu0 0.0
        %748 = vmatprep.subr.mxu0 0.0
        %749 = vmatpush1.msra.mxu0 0.0
        %750 = vmatprep.subr.mxu0 0.0
        %751 = vmatpush1.msra.mxu0 0.0
        %752 = vmatprep.subr.mxu0 0.0
        %753 = vmatpush1.msra.mxu0 0.0
        %754 = vmatprep.subr.mxu0 0.0
        %755 = vmatpush1.msra.mxu0 0.0
        %756 = vmatprep.mubr.f32.mxu0 0.0
        %757 = vmatmul.mubr.f32.gmra.mrb[0].mxu0 %v687
        %v758 = vpop.f32.mrb[0].mxu0
        %v759 = vadd.f32 %v679, %v758
        %v760 = vpop.f32.mrb[0].mxu0
        %761 = vmatprep.mubr.f32.mxu0 0.0
        %762 = vmatmul.mubr.f32.gmra.mrb[0].mxu0 %v690
        %v763 = vpop.f32.mrb[0].mxu0
        %v764 = vadd.f32 %v684, %v763
        %v765 = vpop.f32.mrb[0].mxu0
        %766 = vdwg.mxu0
        %v767 = vmul.f32 %v759, 1.442695
        %v768 = vpow.pop %v767
        %v769 = vmul.f32 %v298, %v768
        %v770 = vadd.f32 %v769, %v764
        %s771 = scalar_lea.vmem %s291, 16 [#allocation3]
        %772 = vst [vmem:[%s771] sm:$0xff] %v770
        %773 = vst [vmem:[%s771 + $0x8] sm:$0xff] %v529
        %v774 = vrot.slane %v759, 4
        %v775 = vadd.f32 %v759, %v774
        %v776 = vrot.slane %v775, 2
        %v777 = vadd.f32 %v775, %v776
        %v778 = vrot.slane %v777, 1
        %v779 = vadd.f32 %v777, %v778
        %v780 = vadd.f32 %v538, %v779
        %s781 = scalar_lea.vmem %s1, 64
        %v782 = vld [vmem:[%s781] sm:$0xff]
        %v783 = vld [vmem:[%s781 + $0x8] sm:$0xff]
        %v784 = vld [vmem:[%s781 + $0x10] sm:$0xff]
        %v785 = vld [vmem:[%s781 + $0x18] sm:$0xff]
        %s786 = scalar_lea.vmem %s2, 64
        %v787 = vld [vmem:[%s786] sm:$0xff]
        %v788 = vld [vmem:[%s786 + $0x8] sm:$0xff]
        %v789 = vld [vmem:[%s786 + $0x10] sm:$0xff]
        %v790 = vld [vmem:[%s786 + $0x18] sm:$0xff]
        %792 = vset.pattern.permute.xlu0 0
        %793 = vperm.xlu0 %792, %v787
        %v794 = vpop.permute.xlu0 %793
        %797 = vset.pattern.permute.xlu0 0
        %798 = vperm.xlu0 %797, %v788
        %v799 = vpop.permute.xlu0 %798
        %802 = vset.pattern.permute.xlu0 0
        %803 = vperm.xlu0 %802, %v789
        %v804 = vpop.permute.xlu0 %803
        %807 = vset.pattern.permute.xlu0 0
        %808 = vperm.xlu0 %807, %v790
        %v809 = vpop.permute.xlu0 %808
        %v812 = vsel %vm328, %v782, 0
        %v815 = vsel %vm328, %v783, 0
        %v818 = vsel %vm328, %v784, 0
        %v821 = vsel %vm328, %v785, 0
        %823 = vmatprep.subr.mxu0 0.0
        %824 = vmatpush1.msra.mxu0 %v770
        %825 = vmatprep.subr.mxu0 0.0
        %826 = vmatpush1.msra.mxu0 0.0
        %827 = vmatprep.subr.mxu0 0.0
        %828 = vmatpush1.msra.mxu0 0.0
        %829 = vmatprep.subr.mxu0 0.0
        %830 = vmatpush1.msra.mxu0 0.0
        %831 = vmatprep.subr.mxu0 0.0
        %832 = vmatpush1.msra.mxu0 0.0
        %833 = vmatprep.subr.mxu0 0.0
        %834 = vmatpush1.msra.mxu0 0.0
        %835 = vmatprep.subr.mxu0 0.0
        %836 = vmatpush1.msra.mxu0 0.0
        %837 = vmatprep.subr.mxu0 0.0
        %838 = vmatpush1.msra.mxu0 0.0
        %839 = vmatprep.subr.mxu0 0.0
        %840 = vmatpush1.msra.mxu0 0.0
        %841 = vmatprep.subr.mxu0 0.0
        %842 = vmatpush1.msra.mxu0 0.0
        %843 = vmatprep.subr.mxu0 0.0
        %844 = vmatpush1.msra.mxu0 0.0
        %845 = vmatprep.subr.mxu0 0.0
        %846 = vmatpush1.msra.mxu0 0.0
        %847 = vmatprep.subr.mxu0 0.0
        %848 = vmatpush1.msra.mxu0 0.0
        %849 = vmatprep.subr.mxu0 0.0
        %850 = vmatpush1.msra.mxu0 0.0
        %851 = vmatprep.subr.mxu0 0.0
        %852 = vmatpush1.msra.mxu0 0.0
        %853 = vmatprep.subr.mxu0 0.0
        %854 = vmatpush1.msra.mxu0 0.0
        %855 = vmatprep.subr.mxu0 0.0
        %856 = vmatpush1.msra.mxu0 0.0
        %857 = vmatprep.subr.mxu0 0.0
        %858 = vmatpush1.msra.mxu0 0.0
        %859 = vmatprep.subr.mxu0 0.0
        %860 = vmatpush1.msra.mxu0 0.0
        %861 = vmatprep.subr.mxu0 0.0
        %862 = vmatpush1.msra.mxu0 0.0
        %863 = vmatprep.subr.mxu0 0.0
        %864 = vmatpush1.msra.mxu0 0.0
        %865 = vmatprep.subr.mxu0 0.0
        %866 = vmatpush1.msra.mxu0 0.0
        %867 = vmatprep.subr.mxu0 0.0
        %868 = vmatpush1.msra.mxu0 0.0
        %869 = vmatprep.subr.mxu0 0.0
        %870 = vmatpush1.msra.mxu0 0.0
        %871 = vmatprep.subr.mxu0 0.0
        %872 = vmatpush1.msra.mxu0 0.0
        %873 = vmatprep.subr.mxu0 0.0
        %874 = vmatpush1.msra.mxu0 0.0
        %875 = vmatprep.subr.mxu0 0.0
        %876 = vmatpush1.msra.mxu0 0.0
        %877 = vmatprep.subr.mxu0 0.0
        %878 = vmatpush1.msra.mxu0 0.0
        %879 = vmatprep.subr.mxu0 0.0
        %880 = vmatpush1.msra.mxu0 0.0
        %881 = vmatprep.subr.mxu0 0.0
        %882 = vmatpush1.msra.mxu0 0.0
        %883 = vmatprep.subr.mxu0 0.0
        %884 = vmatpush1.msra.mxu0 0.0
        %885 = vmatprep.subr.mxu0 0.0
        %886 = vmatpush1.msra.mxu0 0.0
        %887 = vmatprep.mubr.f32.mxu0 0.0
        %888 = vmatmul.mubr.f32.gmra.mrb[0].mxu0 %v812
        %v889 = vpop.f32.mrb[0].mxu0
        %v890 = vadd.f32 %v794, %v889
        %v891 = vpop.f32.mrb[0].mxu0
        %892 = vmatprep.mubr.f32.mxu0 0.0
        %893 = vmatmul.mubr.f32.gmra.mrb[0].mxu0 %v815
        %v894 = vpop.f32.mrb[0].mxu0
        %v895 = vadd.f32 %v799, %v894
        %v896 = vpop.f32.mrb[0].mxu0
        %897 = vmatprep.mubr.f32.mxu0 0.0
        %898 = vmatmul.mubr.f32.gmra.mrb[0].mxu0 %v818
        %v899 = vpop.f32.mrb[0].mxu0
        %v900 = vadd.f32 %v804, %v899
        %v901 = vpop.f32.mrb[0].mxu0
        %902 = vmatprep.mubr.f32.mxu0 0.0
        %903 = vmatmul.mubr.f32.gmra.mrb[0].mxu0 %v821
        %v904 = vpop.f32.mrb[0].mxu0
        %v905 = vadd.f32 %v809, %v904
        %v906 = vpop.f32.mrb[0].mxu0
        %907 = vdwg.mxu0
        %v908 = vtanh.pop %v890
        %v909 = vtanh.pop %v895
        %v910 = vtanh.pop %v900
        %v911 = vtanh.pop %v905
        %s912 = scalar_lea.vmem %s3, 32
        %v913 = vld [vmem:[%s912] sm:$0xff]
        %v914 = vld [vmem:[%s912 + $0x8] sm:$0xff]
        %s915 = scalar_lea.vmem %s4, 32
        %v916 = vld [vmem:[%s915] sm:$0xff]
        %v917 = vld [vmem:[%s915 + $0x8] sm:$0xff]
        %919 = vset.pattern.permute.xlu0 0
        %920 = vperm.xlu0 %919, %v916
        %v921 = vpop.permute.xlu0 %920
        %924 = vset.pattern.permute.xlu0 0
        %925 = vperm.xlu0 %924, %v917
        %v926 = vpop.permute.xlu0 %925
        %v929 = vsel %vm444, %v913, 0
        %v932 = vsel %vm444, %v914, 0
        %934 = vmatprep.subr.mxu0 0.0
        %935 = vmatpush1.msra.mxu0 %v908
        %936 = vmatprep.subr.mxu0 0.0
        %937 = vmatpush1.msra.mxu0 %v909
        %938 = vmatprep.subr.mxu0 0.0
        %939 = vmatpush1.msra.mxu0 %v910
        %940 = vmatprep.subr.mxu0 0.0
        %941 = vmatpush1.msra.mxu0 %v911
        %942 = vmatprep.subr.mxu0 0.0
        %943 = vmatpush1.msra.mxu0 0.0
        %944 = vmatprep.subr.mxu0 0.0
        %945 = vmatpush1.msra.mxu0 0.0
        %946 = vmatprep.subr.mxu0 0.0
        %947 = vmatpush1.msra.mxu0 0.0
        %948 = vmatprep.subr.mxu0 0.0
        %949 = vmatpush1.msra.mxu0 0.0
        %950 = vmatprep.subr.mxu0 0.0
        %951 = vmatpush1.msra.mxu0 0.0
        %952 = vmatprep.subr.mxu0 0.0
        %953 = vmatpush1.msra.mxu0 0.0
        %954 = vmatprep.subr.mxu0 0.0
        %955 = vmatpush1.msra.mxu0 0.0
        %956 = vmatprep.subr.mxu0 0.0
        %957 = vmatpush1.msra.mxu0 0.0
        %958 = vmatprep.subr.mxu0 0.0
        %959 = vmatpush1.msra.mxu0 0.0
        %960 = vmatprep.subr.mxu0 0.0
        %961 = vmatpush1.msra.mxu0 0.0
        %962 = vmatprep.subr.mxu0 0.0
        %963 = vmatpush1.msra.mxu0 0.0
        %964 = vmatprep.subr.mxu0 0.0
        %965 = vmatpush1.msra.mxu0 0.0
        %966 = vmatprep.subr.mxu0 0.0
        %967 = vmatpush1.msra.mxu0 0.0
        %968 = vmatprep.subr.mxu0 0.0
        %969 = vmatpush1.msra.mxu0 0.0
        %970 = vmatprep.subr.mxu0 0.0
        %971 = vmatpush1.msra.mxu0 0.0
        %972 = vmatprep.subr.mxu0 0.0
        %973 = vmatpush1.msra.mxu0 0.0
        %974 = vmatprep.subr.mxu0 0.0
        %975 = vmatpush1.msra.mxu0 0.0
        %976 = vmatprep.subr.mxu0 0.0
        %977 = vmatpush1.msra.mxu0 0.0
        %978 = vmatprep.subr.mxu0 0.0
        %979 = vmatpush1.msra.mxu0 0.0
        %980 = vmatprep.subr.mxu0 0.0
        %981 = vmatpush1.msra.mxu0 0.0
        %982 = vmatprep.subr.mxu0 0.0
        %983 = vmatpush1.msra.mxu0 0.0
        %984 = vmatprep.subr.mxu0 0.0
        %985 = vmatpush1.msra.mxu0 0.0
        %986 = vmatprep.subr.mxu0 0.0
        %987 = vmatpush1.msra.mxu0 0.0
        %988 = vmatprep.subr.mxu0 0.0
        %989 = vmatpush1.msra.mxu0 0.0
        %990 = vmatprep.subr.mxu0 0.0
        %991 = vmatpush1.msra.mxu0 0.0
        %992 = vmatprep.subr.mxu0 0.0
        %993 = vmatpush1.msra.mxu0 0.0
        %994 = vmatprep.subr.mxu0 0.0
        %995 = vmatpush1.msra.mxu0 0.0
        %996 = vmatprep.subr.mxu0 0.0
        %997 = vmatpush1.msra.mxu0 0.0
        %998 = vmatprep.mubr.f32.mxu0 0.0
        %999 = vmatmul.mubr.f32.gmra.mrb[0].mxu0 %v929
        %v1000 = vpop.f32.mrb[0].mxu0
        %v1001 = vadd.f32 %v921, %v1000
        %v1002 = vpop.f32.mrb[0].mxu0
        %1003 = vmatprep.mubr.f32.mxu0 0.0
        %1004 = vmatmul.mubr.f32.gmra.mrb[0].mxu0 %v932
        %v1005 = vpop.f32.mrb[0].mxu0
        %v1006 = vadd.f32 %v926, %v1005
        %v1007 = vpop.f32.mrb[0].mxu0
        %1008 = vdwg.mxu0
        %v1009 = vmul.f32 %v1001, 1.442695
        %v1010 = vpow.pop %v1009
        %v1011 = vmul.f32 %v529, %v1010
        %v1012 = vadd.f32 %v1011, %v1006
        %s1013 = scalar_lea.vmem %s291, 32 [#allocation3]
        %1014 = vst [vmem:[%s1013] sm:$0xff] %v770
        %1015 = vst [vmem:[%s1013 + $0x8] sm:$0xff] %v1012
        %v1016 = vrot.slane %v1001, 4
        %v1017 = vadd.f32 %v1001, %v1016
        %v1018 = vrot.slane %v1017, 2
        %v1019 = vadd.f32 %v1017, %v1018
        %v1020 = vrot.slane %v1019, 1
        %v1021 = vadd.f32 %v1019, %v1020
        %v1022 = vadd.f32 %v780, %v1021
        %s1023 = scalar_lea.vmem %s1, 96
        %v1024 = vld [vmem:[%s1023] sm:$0xff]
        %v1025 = vld [vmem:[%s1023 + $0x8] sm:$0xff]
        %v1026 = vld [vmem:[%s1023 + $0x10] sm:$0xff]
        %v1027 = vld [vmem:[%s1023 + $0x18] sm:$0xff]
        %s1028 = scalar_lea.vmem %s2, 96
        %v1029 = vld [vmem:[%s1028] sm:$0xff]
        %v1030 = vld [vmem:[%s1028 + $0x8] sm:$0xff]
        %v1031 = vld [vmem:[%s1028 + $0x10] sm:$0xff]
        %v1032 = vld [vmem:[%s1028 + $0x18] sm:$0xff]
        %1034 = vset.pattern.permute.xlu0 0
        %1035 = vperm.xlu0 %1034, %v1029
        %v1036 = vpop.permute.xlu0 %1035
        %1039 = vset.pattern.permute.xlu0 0
        %1040 = vperm.xlu0 %1039, %v1030
        %v1041 = vpop.permute.xlu0 %1040
        %1044 = vset.pattern.permute.xlu0 0
        %1045 = vperm.xlu0 %1044, %v1031
        %v1046 = vpop.permute.xlu0 %1045
        %1049 = vset.pattern.permute.xlu0 0
        %1050 = vperm.xlu0 %1049, %v1032
        %v1051 = vpop.permute.xlu0 %1050
        %v1054 = vsel %vm328, %v1024, 0
        %v1057 = vsel %vm328, %v1025, 0
        %v1060 = vsel %vm328, %v1026, 0
        %v1063 = vsel %vm328, %v1027, 0
        %1065 = vmatprep.subr.mxu0 0.0
        %1066 = vmatpush1.msra.mxu0 %v1012
        %1067 = vmatprep.subr.mxu0 0.0
        %1068 = vmatpush1.msra.mxu0 0.0
        %1069 = vmatprep.subr.mxu0 0.0
        %1070 = vmatpush1.msra.mxu0 0.0
        %1071 = vmatprep.subr.mxu0 0.0
        %1072 = vmatpush1.msra.mxu0 0.0
        %1073 = vmatprep.subr.mxu0 0.0
        %1074 = vmatpush1.msra.mxu0 0.0
        %1075 = vmatprep.subr.mxu0 0.0
        %1076 = vmatpush1.msra.mxu0 0.0
        %1077 = vmatprep.subr.mxu0 0.0
        %1078 = vmatpush1.msra.mxu0 0.0
        %1079 = vmatprep.subr.mxu0 0.0
        %1080 = vmatpush1.msra.mxu0 0.0
        %1081 = vmatprep.subr.mxu0 0.0
        %1082 = vmatpush1.msra.mxu0 0.0
        %1083 = vmatprep.subr.mxu0 0.0
        %1084 = vmatpush1.msra.mxu0 0.0
        %1085 = vmatprep.subr.mxu0 0.0
        %1086 = vmatpush1.msra.mxu0 0.0
        %1087 = vmatprep.subr.mxu0 0.0
        %1088 = vmatpush1.msra.mxu0 0.0
        %1089 = vmatprep.subr.mxu0 0.0
        %1090 = vmatpush1.msra.mxu0 0.0
        %1091 = vmatprep.subr.mxu0 0.0
        %1092 = vmatpush1.msra.mxu0 0.0
        %1093 = vmatprep.subr.mxu0 0.0
        %1094 = vmatpush1.msra.mxu0 0.0
        %1095 = vmatprep.subr.mxu0 0.0
        %1096 = vmatpush1.msra.mxu0 0.0
        %1097 = vmatprep.subr.mxu0 0.0
        %1098 = vmatpush1.msra.mxu0 0.0
        %1099 = vmatprep.subr.mxu0 0.0
        %1100 = vmatpush1.msra.mxu0 0.0
        %1101 = vmatprep.subr.mxu0 0.0
        %1102 = vmatpush1.msra.mxu0 0.0
        %1103 = vmatprep.subr.mxu0 0.0
        %1104 = vmatpush1.msra.mxu0 0.0
        %1105 = vmatprep.subr.mxu0 0.0
        %1106 = vmatpush1.msra.mxu0 0.0
        %1107 = vmatprep.subr.mxu0 0.0
        %1108 = vmatpush1.msra.mxu0 0.0
        %1109 = vmatprep.subr.mxu0 0.0
        %1110 = vmatpush1.msra.mxu0 0.0
        %1111 = vmatprep.subr.mxu0 0.0
        %1112 = vmatpush1.msra.mxu0 0.0
        %1113 = vmatprep.subr.mxu0 0.0
        %1114 = vmatpush1.msra.mxu0 0.0
        %1115 = vmatprep.subr.mxu0 0.0
        %1116 = vmatpush1.msra.mxu0 0.0
        %1117 = vmatprep.subr.mxu0 0.0
        %1118 = vmatpush1.msra.mxu0 0.0
        %1119 = vmatprep.subr.mxu0 0.0
        %1120 = vmatpush1.msra.mxu0 0.0
        %1121 = vmatprep.subr.mxu0 0.0
        %1122 = vmatpush1.msra.mxu0 0.0
        %1123 = vmatprep.subr.mxu0 0.0
        %1124 = vmatpush1.msra.mxu0 0.0
        %1125 = vmatprep.subr.mxu0 0.0
        %1126 = vmatpush1.msra.mxu0 0.0
        %1127 = vmatprep.subr.mxu0 0.0
        %1128 = vmatpush1.msra.mxu0 0.0
        %1129 = vmatprep.mubr.f32.mxu0 0.0
        %1130 = vmatmul.mubr.f32.gmra.mrb[0].mxu0 %v1054
        %v1131 = vpop.f32.mrb[0].mxu0
        %v1132 = vadd.f32 %v1036, %v1131
        %v1133 = vpop.f32.mrb[0].mxu0
        %1134 = vmatprep.mubr.f32.mxu0 0.0
        %1135 = vmatmul.mubr.f32.gmra.mrb[0].mxu0 %v1057
        %v1136 = vpop.f32.mrb[0].mxu0
        %v1137 = vadd.f32 %v1041, %v1136
        %v1138 = vpop.f32.mrb[0].mxu0
        %1139 = vmatprep.mubr.f32.mxu0 0.0
        %1140 = vmatmul.mubr.f32.gmra.mrb[0].mxu0 %v1060
        %v1141 = vpop.f32.mrb[0].mxu0
        %v1142 = vadd.f32 %v1046, %v1141
        %v1143 = vpop.f32.mrb[0].mxu0
        %1144 = vmatprep.mubr.f32.mxu0 0.0
        %1145 = vmatmul.mubr.f32.gmra.mrb[0].mxu0 %v1063
        %v1146 = vpop.f32.mrb[0].mxu0
        %v1147 = vadd.f32 %v1051, %v1146
        %v1148 = vpop.f32.mrb[0].mxu0
        %1149 = vdwg.mxu0
        %v1150 = vtanh.pop %v1132
        %v1151 = vtanh.pop %v1137
        %v1152 = vtanh.pop %v1142
        %v1153 = vtanh.pop %v1147
        %s1154 = scalar_lea.vmem %s3, 48
        %v1155 = vld [vmem:[%s1154] sm:$0xff]
        %v1156 = vld [vmem:[%s1154 + $0x8] sm:$0xff]
        %s1157 = scalar_lea.vmem %s4, 48
        %v1158 = vld [vmem:[%s1157] sm:$0xff]
        %v1159 = vld [vmem:[%s1157 + $0x8] sm:$0xff]
        %1161 = vset.pattern.permute.xlu0 0
        %1162 = vperm.xlu0 %1161, %v1158
        %v1163 = vpop.permute.xlu0 %1162
        %1166 = vset.pattern.permute.xlu0 0
        %1167 = vperm.xlu0 %1166, %v1159
        %v1168 = vpop.permute.xlu0 %1167
        %v1171 = vsel %vm444, %v1155, 0
        %v1174 = vsel %vm444, %v1156, 0
        %1176 = vmatprep.subr.mxu0 0.0
        %1177 = vmatpush1.msra.mxu0 %v1150
        %1178 = vmatprep.subr.mxu0 0.0
        %1179 = vmatpush1.msra.mxu0 %v1151
        %1180 = vmatprep.subr.mxu0 0.0
        %1181 = vmatpush1.msra.mxu0 %v1152
        %1182 = vmatprep.subr.mxu0 0.0
        %1183 = vmatpush1.msra.mxu0 %v1153
        %1184 = vmatprep.subr.mxu0 0.0
        %1185 = vmatpush1.msra.mxu0 0.0
        %1186 = vmatprep.subr.mxu0 0.0
        %1187 = vmatpush1.msra.mxu0 0.0
        %1188 = vmatprep.subr.mxu0 0.0
        %1189 = vmatpush1.msra.mxu0 0.0
        %1190 = vmatprep.subr.mxu0 0.0
        %1191 = vmatpush1.msra.mxu0 0.0
        %1192 = vmatprep.subr.mxu0 0.0
        %1193 = vmatpush1.msra.mxu0 0.0
        %1194 = vmatprep.subr.mxu0 0.0
        %1195 = vmatpush1.msra.mxu0 0.0
        %1196 = vmatprep.subr.mxu0 0.0
        %1197 = vmatpush1.msra.mxu0 0.0
        %1198 = vmatprep.subr.mxu0 0.0
        %1199 = vmatpush1.msra.mxu0 0.0
        %1200 = vmatprep.subr.mxu0 0.0
        %1201 = vmatpush1.msra.mxu0 0.0
        %1202 = vmatprep.subr.mxu0 0.0
        %1203 = vmatpush1.msra.mxu0 0.0
        %1204 = vmatprep.subr.mxu0 0.0
        %1205 = vmatpush1.msra.mxu0 0.0
        %1206 = vmatprep.subr.mxu0 0.0
        %1207 = vmatpush1.msra.mxu0 0.0
        %1208 = vmatprep.subr.mxu0 0.0
        %1209 = vmatpush1.msra.mxu0 0.0
        %1210 = vmatprep.subr.mxu0 0.0
        %1211 = vmatpush1.msra.mxu0 0.0
        %1212 = vmatprep.subr.mxu0 0.0
        %1213 = vmatpush1.msra.mxu0 0.0
        %1214 = vmatprep.subr.mxu0 0.0
        %1215 = vmatpush1.msra.mxu0 0.0
        %1216 = vmatprep.subr.mxu0 0.0
        %1217 = vmatpush1.msra.mxu0 0.0
        %1218 = vmatprep.subr.mxu0 0.0
        %1219 = vmatpush1.msra.mxu0 0.0
        %1220 = vmatprep.subr.mxu0 0.0
        %1221 = vmatpush1.msra.mxu0 0.0
        %1222 = vmatprep.subr.mxu0 0.0
        %1223 = vmatpush1.msra.mxu0 0.0
        %1224 = vmatprep.subr.mxu0 0.0
        %1225 = vmatpush1.msra.mxu0 0.0
        %1226 = vmatprep.subr.mxu0 0.0
        %1227 = vmatpush1.msra.mxu0 0.0
        %1228 = vmatprep.subr.mxu0 0.0
        %1229 = vmatpush1.msra.mxu0 0.0
        %1230 = vmatprep.subr.mxu0 0.0
        %1231 = vmatpush1.msra.mxu0 0.0
        %1232 = vmatprep.subr.mxu0 0.0
        %1233 = vmatpush1.msra.mxu0 0.0
        %1234 = vmatprep.subr.mxu0 0.0
        %1235 = vmatpush1.msra.mxu0 0.0
        %1236 = vmatprep.subr.mxu0 0.0
        %1237 = vmatpush1.msra.mxu0 0.0
        %1238 = vmatprep.subr.mxu0 0.0
        %1239 = vmatpush1.msra.mxu0 0.0
        %1240 = vmatprep.mubr.f32.mxu0 0.0
        %1241 = vmatmul.mubr.f32.gmra.mrb[0].mxu0 %v1171
        %v1242 = vpop.f32.mrb[0].mxu0
        %v1243 = vadd.f32 %v1163, %v1242
        %v1244 = vpop.f32.mrb[0].mxu0
        %1245 = vmatprep.mubr.f32.mxu0 0.0
        %1246 = vmatmul.mubr.f32.gmra.mrb[0].mxu0 %v1174
        %v1247 = vpop.f32.mrb[0].mxu0
        %v1248 = vadd.f32 %v1168, %v1247
        %v1249 = vpop.f32.mrb[0].mxu0
        %1250 = vdwg.mxu0
        %v1251 = vmul.f32 %v1243, 1.442695
        %v1252 = vpow.pop %v1251
        %v1253 = vmul.f32 %v770, %v1252
        %v1254 = vadd.f32 %v1253, %v1248
        %s1255 = scalar_lea.vmem %s291, 48 [#allocation3]
        %1256 = vst [vmem:[%s1255] sm:$0xff] %v1254
        %1257 = vst [vmem:[%s1255 + $0x8] sm:$0xff] %v1012
        %v1258 = vrot.slane %v1243, 4
        %v1259 = vadd.f32 %v1243, %v1258
        %v1260 = vrot.slane %v1259, 2
        %v1261 = vadd.f32 %v1259, %v1260
        %v1262 = vrot.slane %v1261, 1
        %v1263 = vadd.f32 %v1261, %v1262
        %v1264 = vadd.f32 %v1022, %v1263
        %1265 = vst [vmem:[%s297] sm:$0x1] %v1264
        %s1266 = sand.u32 %s142, 1
        %s1267 = scalar_lea.sflag [#allocation4], %s1266
        %s1268 = sand.u32 %s142, 1
        %s1269 = smul.addr %s1268, 64
        %s1270 = scalar_lea.vmem [#allocation3], %s1269
        %s1271 = sand.u32 %s168, 1
        %s1272 = scalar_lea.sflag [#allocation6], %s1271
        %s1273 = sand.u32 %s168, 1
        %s1274 = scalar_lea.vmem [#allocation5], %s1273
        // Predicated region
        $region79: #{tpu_custom_call.1} parent=73 // pred_check
          %p1275 = pneg %p152
        $region80: #{tpu_custom_call.1} parent=73 // pred_check_branch
          %1277 = sbr.rel (%p1275) target = $region82
        $region81: #{tpu_custom_call.1} parent=73 // pred_region
          %s1279 = ssub.s32 1024, 1024
          %1280 = vsyncadd %s1267, %s1279
          %s1281 = smul.addr %s24, 128
          %s1282 = scalar_lea.hbm %s5, %s1281
          %s1283 = sshll.u32 %s1270, 4
          %s1284 = int_to_ptr.vmem [resolvable:$true] %s1283
          %1289 = dma.vmem_to_hbm [thread:$0]  %s1284, 1024, %s1282, %s1267, 128, 256, 8
        $region82: #{tpu_custom_call.1} parent=73 // pred_fallthru
          _
        // Predicated region
        $region83: #{tpu_custom_call.1} parent=73 // pred_check
          %p1290 = pneg %p178
        $region84: #{tpu_custom_call.1} parent=73 // pred_check_branch
          %1292 = sbr.rel (%p1290) target = $region86
        $region85: #{tpu_custom_call.1} parent=73 // pred_region
          %s1294 = ssub.s32 16, 16
          %1295 = vsyncadd %s1272, %s1294
          %s1296 = smul.addr %s24, 16
          %s1297 = scalar_lea.hbm %s6, %s1296
          %s1299 = sshll.u32 %s1274, 4
          %s1300 = int_to_ptr.vmem [resolvable:$true] %s1299
          %1302 = dma.vmem_to_hbm [thread:$0]  %s1300, 16, %s1297, %s1272
        $region86: #{tpu_custom_call.1} parent=73 // pred_fallthru
          _
      $region74: #{tpu_custom_call.1} parent=5 // pred_fallthru
        _
      %p1303 = scmp.le.s32.totalorder 2, %s19
      // Predicated region
      $region87: #{tpu_custom_call.1} parent=5 // pred_check
        %p1304 = pneg %p1303
      $region88: #{tpu_custom_call.1} parent=5 // pred_check_branch
        %1306 = sbr.rel (%p1304) target = $region90
      $region89: #{tpu_custom_call.1} parent=5 // pred_region
        %s1307 = ssub.s32 %s19, 2
        // Predicated region
        $region91: #{tpu_custom_call.1} parent=89 // pred_check
          %p1308 = pneg %p158
        $region92: #{tpu_custom_call.1} parent=89 // pred_check_branch
          %1310 = sbr.rel (%p1308) target = $region94
        $region93: #{tpu_custom_call.1} parent=89 // pred_region
          %s1311 = sand.u32 %s143, 1
          %s1312 = scalar_lea.sflag [#allocation4], %s1311
          %s1313 = sand.u32 %s143, 1
          %s1314 = smul.addr %s1313, 64
          %s1315 = scalar_lea.vmem [#allocation3], %s1314
          %1316 = dma.done %s1312, 1024
        $region94: #{tpu_custom_call.1} parent=89 // pred_fallthru
          _
        // Predicated region
        $region95: #{tpu_custom_call.1} parent=89 // pred_check
          %p1317 = pneg %p184
        $region96: #{tpu_custom_call.1} parent=89 // pred_check_branch
          %1319 = sbr.rel (%p1317) target = $region98
        $region97: #{tpu_custom_call.1} parent=89 // pred_region
          %s1320 = sand.u32 %s169, 1
          %s1321 = scalar_lea.sflag [#allocation6], %s1320
          %s1322 = sand.u32 %s169, 1
          %s1323 = scalar_lea.vmem [#allocation5], %s1322
          %1324 = dma.done %s1321, 16
        $region98: #{tpu_custom_call.1} parent=89 // pred_fallthru
          _
      $region90: #{tpu_custom_call.1} parent=5 // pred_fallthru
        _
    $region6: #{tpu_custom_call.1} parent=1 // loop_footer
      %s23 = sadd.s32 1, %s19
    $region7: #{tpu_custom_call.1} parent=1 // loop_footer_branch
      %18 = sbr.rel target = $region3
    $region8: #{tpu_custom_call.1} parent=1 // loop_exit
      _
    %1325 = vsyncpa [#allocation4], 1
    %s1326 = scalar_lea.sflag [#allocation4], 1
    %1327 = vsyncpa %s1326, 1
    %1328 = vsyncpa [#allocation6], 1
    %s1329 = scalar_lea.sflag [#allocation6], 1
    %1330 = vsyncpa %s1329, 1

</llo_original>
